<compile_context>
chip_gen: v6e
topology: v6e:2x2x1
jax: 0.10.0
libtpu: 0.0.40
codegen_flags: <defaults>
</compile_context>

<pallas_src>
import functools

import jax
import jax.numpy as jnp
from jax.experimental import pallas as pl
from jax.experimental.pallas import tpu as pltpu


_TOP = 6  # unused alignment rows so the 2 top-halo rows end exactly at an
          # (8,128) f32 tile boundary; interior rows start at local row 8.


def _silu(y):
    return y * jax.nn.sigmoid(y)


def _fused_block_kernel(x_tile_ref, x_any_ref, w1_ref, w2_ref, b1_ref, b2_ref,
                        o_ref, xbuf, sem, *, th, WC, H):
    n = pl.program_id(0)
    i = pl.program_id(1)
    n_tiles = pl.num_programs(1)
    r0 = i * th
    int0 = _TOP + 2                       # local row of global x row r0

    def halo_top():
        return pltpu.make_async_copy(
            x_any_ref.at[n, pl.ds(r0 - 2, 2), pl.ds(0, WC)],
            xbuf.at[pl.ds(_TOP, 2), pl.ds(0, WC)], sem.at[0])

    def halo_bot():
        return pltpu.make_async_copy(
            x_any_ref.at[n, pl.ds(r0 + th, 2), pl.ds(0, WC)],
            xbuf.at[pl.ds(int0 + th, 2), pl.ds(0, WC)], sem.at[1])

    # ---- kick off the (tiny, latency-bound) halo DMAs first ---------------
    @pl.when(i > 0)
    def _():
        halo_top().start()

    @pl.when(i < n_tiles - 1)
    def _():
        halo_bot().start()

    # ---- interior rows come from the auto-pipelined tile; image top/bottom
    #      rows are genuine SAME zero padding of conv1 --------------------
    xt = x_tile_ref[0]                    # (th, WC) f32, kept live for residual
    xbuf[int0:int0 + th, :] = xt

    @pl.when(i == 0)
    def _():
        xbuf[_TOP:_TOP + 2, :] = jnp.zeros((2, WC), xbuf.dtype)

    @pl.when(i == n_tiles - 1)
    def _():
        xbuf[int0 + th:int0 + th + 2, :] = jnp.zeros((2, WC), xbuf.dtype)

    # ---- wait for the halos only now (overlapped with the stores above) ---
    @pl.when(i > 0)
    def _():
        halo_top().wait()

    @pl.when(i < n_tiles - 1)
    def _():
        halo_bot().wait()

    # ---- conv1 (+ folded BN1) + SiLU: h rows [r0-1, r0+th+1) --------------
    # Each dy tap is one lane-dense matmul against the banded (WC, WC) weight.
    acc1 = jnp.dot(xbuf[_TOP:_TOP + th + 2, :].astype(jnp.bfloat16),
                   w1_ref[0], preferred_element_type=jnp.float32)
    for dy in (1, 2):
        acc1 = acc1 + jnp.dot(
            xbuf[_TOP + dy:_TOP + dy + th + 2, :].astype(jnp.bfloat16),
            w1_ref[dy], preferred_element_type=jnp.float32)
    h = _silu(acc1 + b1_ref[...])
    # conv2's SAME padding: h rows outside [0, H) are zero, not conv1(x_pad).
    hrow = r0 - 1 + jax.lax.broadcasted_iota(jnp.int32, (th + 2, 1), 0)
    h = jnp.where((hrow >= 0) & (hrow < H), h, 0.0).astype(jnp.bfloat16)

    # ---- conv2 (+ folded BN2) + residual + final SiLU ----------------------
    acc2 = jnp.dot(h[0:th, :], w2_ref[0], preferred_element_type=jnp.float32)
    for dy in (1, 2):
        acc2 = acc2 + jnp.dot(h[dy:dy + th, :], w2_ref[dy],
                              preferred_element_type=jnp.float32)
    y = _silu(acc2 + b2_ref[...] + xt)    # residual add stays in f32
    o_ref[0] = y.astype(o_ref.dtype)


def _pick_tile_rows(N, H, W, C, vmem_budget_bytes=24 << 20):
    """Largest row tile that fits the VMEM budget.

    Accounts for Mosaic padding the minor dim to 128 lanes (v7x concern) and
    prefers an even total grid so v7x's two TensorCores stay balanced.  On
    v5e / v6e (128 MiB VMEM) a larger budget may be passed for big inputs.
    """
    WC = W * C
    lane = max(128, ((WC + 127) // 128) * 128)

    def footprint(th):
        tiles = 2 * (2 * th * lane * 4)            # in + out tiles, x2 buffers
        xbuf = (th + 10) * lane * 4                # f32 row window scratch
        weights = 2 * (3 * lane * lane * 2) * 2    # banded bf16 weights, x2 buffers
        return tiles + xbuf + weights + 4 * lane * 4

    cands = [th for th in range(2, H + 1)
             if H % th == 0 and (th % 8 == 0 or th == H)
             and footprint(th) <= vmem_budget_bytes]
    if not cands:
        return H
    for th in sorted(cands, reverse=True):         # prefer even grid for v7x
        if (N * (H // th)) % 2 == 0:
            return th
    return max(cands)


def _fused_residual_block(x_lane, big1, big2, b1, b2, tile_rows):
    N, H, WC = x_lane.shape
    th = tile_rows
    assert H % th == 0 and (th % 8 == 0 or th == H), "bad tile_rows"
    n_tiles = H // th
    kernel = functools.partial(_fused_block_kernel, th=th, WC=WC, H=H)
    return pl.pallas_call(
        kernel,
        out_shape=jax.ShapeDtypeStruct((N, H, WC), x_lane.dtype),
        grid=(N, n_tiles),
        in_specs=[
            pl.BlockSpec((1, th, WC), lambda n, i: (n, i, 0)),  # pipelined x tile
            pl.BlockSpec(memory_space=pl.ANY),                   # raw x for halo DMAs
            pl.BlockSpec((3, WC, WC), lambda n, i: (0, 0, 0)),   # banded conv1 (bf16)
            pl.BlockSpec((3, WC, WC), lambda n, i: (0, 0, 0)),   # banded conv2 (bf16)
            pl.BlockSpec((1, WC), lambda n, i: (0, 0)),          # bias1 (f32)
            pl.BlockSpec((1, WC), lambda n, i: (0, 0)),          # bias2 (f32)
        ],
        out_specs=pl.BlockSpec((1, th, WC), lambda n, i: (n, i, 0)),
        scratch_shapes=[
            pltpu.VMEM((_TOP + 2 + th + 2, WC), jnp.float32),    # contiguous row window
            pltpu.SemaphoreType.DMA((2,)),
        ],
        compiler_params=pltpu.CompilerParams(
            dimension_semantics=("parallel", "parallel"),
            vmem_limit_bytes=32 * 1024 * 1024,
        ),
    )(x_lane, x_lane, big1, big2, b1, b2)


# ---------------------------- parameter prep --------------------------------

def _fold_bn(gamma, beta, mean, var, eps=1e-5):
    scale = gamma / jnp.sqrt(var + eps)
    return scale, beta - mean * scale


def _banded_weight(w_hwio, scale, W):
    """(3,3,Ci,Co) HWIO weight (BN scale folded into Co) -> (3, W*Ci, W*Co).

    big[dy][win*C+ci, wout*C+co] = w[dy, win-wout+1, ci, co] for |win-wout|<=1,
    else 0 — so each dy tap of the 3x3 SAME conv is one lane-dense matmul and
    column zero-padding is encoded directly in the weights.
    """
    C = w_hwio.shape[-1]
    w = w_hwio * scale[None, None, None, :]
    win = jnp.arange(W)[:, None]
    wout = jnp.arange(W)[None, :]
    dx = win - wout + 1
    valid = ((dx >= 0) & (dx <= 2)).astype(w.dtype)
    big = w[:, jnp.clip(dx, 0, 2)] * valid[None, :, :, None, None]
    big = jnp.transpose(big, (0, 1, 3, 2, 4)).reshape(3, W * C, W * C)
    return big.astype(jnp.bfloat16)


def init_params(channels, key):
    """Deterministic synthetic parameters matching ResidualBlock(channels)."""
    C = channels
    ks = jax.random.split(key, 10)
    w1_oihw = 0.1 * jax.random.normal(ks[0], (C, C, 3, 3), jnp.float32)
    w2_oihw = 0.1 * jax.random.normal(ks[1], (C, C, 3, 3), jnp.float32)
    return {
        "w1": jnp.transpose(w1_oihw, (2, 3, 1, 0)),   # HWIO, f32
        "w2": jnp.transpose(w2_oihw, (2, 3, 1, 0)),
        "gamma1": 1.0 + 0.1 * jax.random.normal(ks[2], (C,), jnp.float32),
        "beta1": 0.1 * jax.random.normal(ks[3], (C,), jnp.float32),
        "mean1": 0.05 * jax.random.normal(ks[4], (C,), jnp.float32),
        "var1": 1.0 + 0.1 * jnp.abs(jax.random.normal(ks[5], (C,), jnp.float32)),
        "gamma2": 1.0 + 0.1 * jax.random.normal(ks[6], (C,), jnp.float32),
        "beta2": 0.1 * jax.random.normal(ks[7], (C,), jnp.float32),
        "mean2": 0.05 * jax.random.normal(ks[8], (C,), jnp.float32),
        "var2": 1.0 + 0.1 * jnp.abs(jax.random.normal(ks[9], (C,), jnp.float32)),
    }


def prepare_kernel_params(params, W):
    """Host-side prep: fold BN scales into the weights, build the banded bf16
    weight matrices and W-tiled f32 biases for the lane-dense kernel."""
    C = params["w1"].shape[-1]
    assert W * C <= 512, "banded-weight formulation targets small W*C"
    s1, b1 = _fold_bn(params["gamma1"], params["beta1"], params["mean1"], params["var1"])
    s2, b2 = _fold_bn(params["gamma2"], params["beta2"], params["mean2"], params["var2"])
    return {
        "big1": _banded_weight(params["w1"], s1, W),
        "big2": _banded_weight(params["w2"], s2, W),
        "b1": jnp.tile(b1, W).reshape(1, W * C).astype(jnp.float32),
        "b2": jnp.tile(b2, W).reshape(1, W * C).astype(jnp.float32),
    }


@functools.partial(jax.jit, static_argnames=("tile_rows",))
def residual_block_forward(x_nchw, kparams, tile_rows=None):
    """Forward pass matching ResidualBlock.forward (NCHW in, NCHW out)."""
    N, C, H, W = x_nchw.shape
    # NCHW -> NHWC -> lane-dense (N, H, W*C) slab (last dim maps to lanes).
    x = jnp.transpose(x_nchw, (0, 2, 3, 1)).reshape(N, H, W * C)
    th = tile_rows if tile_rows is not None else _pick_tile_rows(N, H, W, C)
    out = _fused_residual_block(x, kparams["big1"], kparams["big2"],
                                kparams["b1"], kparams["b2"], th)
    return jnp.transpose(out.reshape(N, H, W, C), (0, 3, 1, 2))


# ------------------------------ reference -----------------------------------

def _reference_forward(x_nchw, params, match_bf16=True):
    """Plain-JAX reference.  match_bf16=True mirrors the kernel's bf16 MXU
    operands (BN scale folded into f32 weights, then cast to bf16; f32
    accumulation / f32 elementwise) for a tight comparison."""
    x = jnp.transpose(x_nchw, (0, 2, 3, 1)).astype(jnp.float32)
    dn = ("NHWC", "HWIO", "NHWC")
    s1, b1 = _fold_bn(params["gamma1"], params["beta1"], params["mean1"], params["var1"])
    s2, b2 = _fold_bn(params["gamma2"], params["beta2"], params["mean2"], params["var2"])
    op = jnp.bfloat16 if match_bf16 else jnp.float32
    w1 = (params["w1"] * s1).astype(op)
    w2 = (params["w2"] * s2).astype(op)

    def conv(v, w):
        return jax.lax.conv_general_dilated(
            v.astype(op), w, (1, 1), "SAME", dimension_numbers=dn,
            preferred_element_type=jnp.float32)

    h = conv(x, w1) + b1
    h = h * jax.nn.sigmoid(h)
    o = conv(h, w2) + b2 + x
    o = o * jax.nn.sigmoid(o)
    return jnp.transpose(o, (0, 3, 1, 2))


if __name__ == "__main__":
    N, C, H, W = 2, 8, 16, 16            # W*C == 128: exactly one lane vector
    key = jax.random.PRNGKey(0)
    kx, kp = jax.random.split(key)
    x = jax.random.normal(kx, (N, C, H, W), jnp.float32)
    params = init_params(C, kp)
    kparams = prepare_kernel_params(params, W)

    # tile_rows=8 -> 2 row tiles per image: exercises the halo-DMA paths.
    out = jax.block_until_ready(residual_block_forward(x, kparams, tile_rows=8))
    assert out.shape == (N, C, H, W) and out.dtype == jnp.float32

    ref_bf16 = _reference_forward(x, params, match_bf16=True)
    assert jnp.allclose(out, ref_bf16, atol=5e-4, rtol=5e-4), (
        "max abs diff vs bf16-matched reference: "
        f"{float(jnp.max(jnp.abs(out - ref_bf16)))}")

    ref_f32 = _reference_forward(x, params, match_bf16=False)
    assert jnp.allclose(out, ref_f32, atol=5e-2, rtol=5e-2), (
        "max abs diff vs f32 reference: "
        f"{float(jnp.max(jnp.abs(out - ref_f32)))}")

    # Default tile choice (whole image per step, no halo DMAs) must also match.
    out_full = jax.block_until_ready(residual_block_forward(x, kparams))
    assert jnp.allclose(out_full, ref_bf16, atol=5e-4, rtol=5e-4), (
        "max abs diff (full-image tile) vs bf16-matched reference: "
        f"{float(jnp.max(jnp.abs(out_full - ref_bf16)))}")

    print("KERNEL_OK")
</pallas_src>

<mosaic_0001>
module attributes {stable_mosaic.version = 11 : i64} {
  func.func @_fused_block_kernel(%arg0: i32, %arg1: i32, %arg2: memref<1x8x128xf32, #tpu.memory_space<vmem>>, %arg3: memref<2x16x128xf32, #tpu.memory_space<any>>, %arg4: memref<3x128x128xbf16, #tpu.memory_space<vmem>>, %arg5: memref<3x128x128xbf16, #tpu.memory_space<vmem>>, %arg6: memref<1x128xf32, #tpu.memory_space<vmem>>, %arg7: memref<1x128xf32, #tpu.memory_space<vmem>>, %arg8: memref<1x8x128xf32, #tpu.memory_space<vmem>>, %arg9: memref<18x128xf32, #tpu.memory_space<vmem>>, %arg10: memref<2x!tpu.dma_semaphore, #tpu.memory_space<semaphore_mem>>) attributes {dimension_semantics = [#tpu.dimension_semantics<parallel>, #tpu.dimension_semantics<parallel>], iteration_bounds = array<i64: 2, 2>, scalar_prefetch = 0 : i64, scratch_operands = 2 : i64, tpu.core_type = #tpu.core_type<tc>, window_params = [{transform_indices = @transform_0, window_bounds = array<i64: 1, 8, 128>}, {}, {pipeline_mode = #tpu.pipeline_mode<synchronous>, transform_indices = @transform_2, window_bounds = array<i64: 3, 128, 128>}, {pipeline_mode = #tpu.pipeline_mode<synchronous>, transform_indices = @transform_3, window_bounds = array<i64: 3, 128, 128>}, {pipeline_mode = #tpu.pipeline_mode<synchronous>, transform_indices = @transform_4, window_bounds = array<i64: 1, 128>}, {pipeline_mode = #tpu.pipeline_mode<synchronous>, transform_indices = @transform_5, window_bounds = array<i64: 1, 128>}, {transform_indices = @transform_6, window_bounds = array<i64: 1, 8, 128>}]} {
    %c8_i32 = arith.constant 8 : i32
    %0 = arith.muli %arg1, %c8_i32 : i32
    %c0_i32 = arith.constant 0 : i32
    %1 = arith.cmpi sgt, %arg1, %c0_i32 : i32
    %2 = arith.extui %1 : i1 to i32
    %c0_i32_0 = arith.constant 0 : i32
    %3 = arith.cmpi ne, %2, %c0_i32_0 : i32
    scf.if %3 {
      %c2_i32 = arith.constant 2 : i32
      %89 = arith.subi %0, %c2_i32 : i32
      %c0_i32_50 = arith.constant 0 : i32
      %c0_i32_51 = arith.constant 0 : i32
      %90 = tpu.memref_slice %arg3[%arg0, %89, %c0_i32_51] : memref<2x16x128xf32, #tpu.memory_space<any>> -> memref<1x2x128xf32, #tpu.memory_space<any>>
      %91 = tpu.memref_squeeze %90 : memref<1x2x128xf32, #tpu.memory_space<any>> -> memref<2x128xf32, #tpu.memory_space<any>>
      %c6_i32 = arith.constant 6 : i32
      %c0_i32_52 = arith.constant 0 : i32
      %92 = tpu.memref_slice %arg9[%c6_i32, %c0_i32_52] : memref<18x128xf32, #tpu.memory_space<vmem>> -> memref<2x128xf32, #tpu.memory_space<vmem>>
      %93 = tpu.memref_slice %arg10[%c0_i32_50] : memref<2x!tpu.dma_semaphore, #tpu.memory_space<semaphore_mem>> -> memref<1x!tpu.dma_semaphore, #tpu.memory_space<semaphore_mem>>
      %94 = tpu.memref_squeeze %93 : memref<1x!tpu.dma_semaphore, #tpu.memory_space<semaphore_mem>> -> memref<!tpu.dma_semaphore, #tpu.memory_space<semaphore_mem>>
      tpu.enqueue_dma source(%91 : memref<2x128xf32, #tpu.memory_space<any>>) target(%92 : memref<2x128xf32, #tpu.memory_space<vmem>>) target_semaphore(%94 : memref<!tpu.dma_semaphore, #tpu.memory_space<semaphore_mem>>)
    } else {
    }
    %c1_i32 = arith.constant 1 : i32
    %4 = arith.cmpi slt, %arg1, %c1_i32 : i32
    %5 = arith.extui %4 : i1 to i32
    %c0_i32_1 = arith.constant 0 : i32
    %6 = arith.cmpi ne, %5, %c0_i32_1 : i32
    scf.if %6 {
      %c8_i32_50 = arith.constant 8 : i32
      %89 = arith.addi %0, %c8_i32_50 : i32
      %c1_i32_51 = arith.constant 1 : i32
      %c0_i32_52 = arith.constant 0 : i32
      %90 = tpu.memref_slice %arg3[%arg0, %89, %c0_i32_52] : memref<2x16x128xf32, #tpu.memory_space<any>> -> memref<1x2x128xf32, #tpu.memory_space<any>>
      %91 = tpu.memref_squeeze %90 : memref<1x2x128xf32, #tpu.memory_space<any>> -> memref<2x128xf32, #tpu.memory_space<any>>
      %c16_i32_53 = arith.constant 16 : i32
      %c0_i32_54 = arith.constant 0 : i32
      %92 = tpu.memref_slice %arg9[%c16_i32_53, %c0_i32_54] : memref<18x128xf32, #tpu.memory_space<vmem>> -> memref<2x128xf32, #tpu.memory_space<vmem>>
      %93 = tpu.memref_slice %arg10[%c1_i32_51] : memref<2x!tpu.dma_semaphore, #tpu.memory_space<semaphore_mem>> -> memref<1x!tpu.dma_semaphore, #tpu.memory_space<semaphore_mem>>
      %94 = tpu.memref_squeeze %93 : memref<1x!tpu.dma_semaphore, #tpu.memory_space<semaphore_mem>> -> memref<!tpu.dma_semaphore, #tpu.memory_space<semaphore_mem>>
      tpu.enqueue_dma source(%91 : memref<2x128xf32, #tpu.memory_space<any>>) target(%92 : memref<2x128xf32, #tpu.memory_space<vmem>>) target_semaphore(%94 : memref<!tpu.dma_semaphore, #tpu.memory_space<semaphore_mem>>)
    } else {
    }
    %c0 = arith.constant 0 : index
    %c0_2 = arith.constant 0 : index
    %c0_3 = arith.constant 0 : index
    %7 = vector.load %arg2[%c0, %c0_2, %c0_3] : memref<1x8x128xf32, #tpu.memory_space<vmem>>, vector<1x8x128xf32>
    %8 = vector.shape_cast %7 : vector<1x8x128xf32> to vector<8x128xf32>
    %c8 = arith.constant 8 : index
    %c0_4 = arith.constant 0 : index
    %9 = vector.load %arg9[%c8, %c0_4] : memref<18x128xf32, #tpu.memory_space<vmem>>, vector<8x128xf32>
    tpu.vector_store %arg9[%c8, %c0_4], %8 {strides = array<i32>} : memref<18x128xf32, #tpu.memory_space<vmem>>, vector<8x128xf32>,
    %c0_i32_5 = arith.constant 0 : i32
    %10 = arith.cmpi eq, %arg1, %c0_i32_5 : i32
    %11 = arith.extui %10 : i1 to i32
    %c0_i32_6 = arith.constant 0 : i32
    %12 = arith.cmpi ne, %11, %c0_i32_6 : i32
    scf.if %12 {
      %cst_50 = arith.constant 0.000000e+00 : f32
      %89 = vector.broadcast %cst_50 : f32 to vector<2x128xf32>
      %c6_51 = arith.constant 6 : index
      %c0_52 = arith.constant 0 : index
      %90 = vector.load %arg9[%c6_51, %c0_52] : memref<18x128xf32, #tpu.memory_space<vmem>>, vector<2x128xf32>
      tpu.vector_store %arg9[%c6_51, %c0_52], %89 {strides = array<i32>} : memref<18x128xf32, #tpu.memory_space<vmem>>, vector<2x128xf32>,
    } else {
    }
    %c1_i32_7 = arith.constant 1 : i32
    %13 = arith.cmpi eq, %arg1, %c1_i32_7 : i32
    %14 = arith.extui %13 : i1 to i32
    %c0_i32_8 = arith.constant 0 : i32
    %15 = arith.cmpi ne, %14, %c0_i32_8 : i32
    scf.if %15 {
      %cst_50 = arith.constant 0.000000e+00 : f32
      %89 = vector.broadcast %cst_50 : f32 to vector<2x128xf32>
      %c16 = arith.constant 16 : index
      %c0_51 = arith.constant 0 : index
      %90 = vector.load %arg9[%c16, %c0_51] : memref<18x128xf32, #tpu.memory_space<vmem>>, vector<2x128xf32>
      tpu.vector_store %arg9[%c16, %c0_51], %89 {strides = array<i32>} : memref<18x128xf32, #tpu.memory_space<vmem>>, vector<2x128xf32>,
    } else {
    }
    %c0_i32_9 = arith.constant 0 : i32
    %16 = arith.cmpi sgt, %arg1, %c0_i32_9 : i32
    %17 = arith.extui %16 : i1 to i32
    %c0_i32_10 = arith.constant 0 : i32
    %18 = arith.cmpi ne, %17, %c0_i32_10 : i32
    scf.if %18 {
      %c2_i32 = arith.constant 2 : i32
      %89 = arith.subi %0, %c2_i32 : i32
      %c0_i32_50 = arith.constant 0 : i32
      %c0_i32_51 = arith.constant 0 : i32
      %90 = tpu.memref_slice %arg3[%arg0, %89, %c0_i32_51] : memref<2x16x128xf32, #tpu.memory_space<any>> -> memref<1x2x128xf32, #tpu.memory_space<any>>
      %91 = tpu.memref_squeeze %90 : memref<1x2x128xf32, #tpu.memory_space<any>> -> memref<2x128xf32, #tpu.memory_space<any>>
      %c6_i32 = arith.constant 6 : i32
      %c0_i32_52 = arith.constant 0 : i32
      %92 = tpu.memref_slice %arg9[%c6_i32, %c0_i32_52] : memref<18x128xf32, #tpu.memory_space<vmem>> -> memref<2x128xf32, #tpu.memory_space<vmem>>
      %93 = tpu.memref_slice %arg10[%c0_i32_50] : memref<2x!tpu.dma_semaphore, #tpu.memory_space<semaphore_mem>> -> memref<1x!tpu.dma_semaphore, #tpu.memory_space<semaphore_mem>>
      %94 = tpu.memref_squeeze %93 : memref<1x!tpu.dma_semaphore, #tpu.memory_space<semaphore_mem>> -> memref<!tpu.dma_semaphore, #tpu.memory_space<semaphore_mem>>
      tpu.wait_dma2 semaphore(%94 : memref<!tpu.dma_semaphore, #tpu.memory_space<semaphore_mem>>) src(%91 : memref<2x128xf32, #tpu.memory_space<any>>) dst(%92 : memref<2x128xf32, #tpu.memory_space<vmem>>)
    } else {
    }
    %c1_i32_11 = arith.constant 1 : i32
    %19 = arith.cmpi slt, %arg1, %c1_i32_11 : i32
    %20 = arith.extui %19 : i1 to i32
    %c0_i32_12 = arith.constant 0 : i32
    %21 = arith.cmpi ne, %20, %c0_i32_12 : i32
    scf.if %21 {
      %c8_i32_50 = arith.constant 8 : i32
      %89 = arith.addi %0, %c8_i32_50 : i32
      %c1_i32_51 = arith.constant 1 : i32
      %c0_i32_52 = arith.constant 0 : i32
      %90 = tpu.memref_slice %arg3[%arg0, %89, %c0_i32_52] : memref<2x16x128xf32, #tpu.memory_space<any>> -> memref<1x2x128xf32, #tpu.memory_space<any>>
      %91 = tpu.memref_squeeze %90 : memref<1x2x128xf32, #tpu.memory_space<any>> -> memref<2x128xf32, #tpu.memory_space<any>>
      %c16_i32_53 = arith.constant 16 : i32
      %c0_i32_54 = arith.constant 0 : i32
      %92 = tpu.memref_slice %arg9[%c16_i32_53, %c0_i32_54] : memref<18x128xf32, #tpu.memory_space<vmem>> -> memref<2x128xf32, #tpu.memory_space<vmem>>
      %93 = tpu.memref_slice %arg10[%c1_i32_51] : memref<2x!tpu.dma_semaphore, #tpu.memory_space<semaphore_mem>> -> memref<1x!tpu.dma_semaphore, #tpu.memory_space<semaphore_mem>>
      %94 = tpu.memref_squeeze %93 : memref<1x!tpu.dma_semaphore, #tpu.memory_space<semaphore_mem>> -> memref<!tpu.dma_semaphore, #tpu.memory_space<semaphore_mem>>
      tpu.wait_dma2 semaphore(%94 : memref<!tpu.dma_semaphore, #tpu.memory_space<semaphore_mem>>) src(%91 : memref<2x128xf32, #tpu.memory_space<any>>) dst(%92 : memref<2x128xf32, #tpu.memory_space<vmem>>)
    } else {
    }
    %c6 = arith.constant 6 : index
    %c0_13 = arith.constant 0 : index
    %22 = vector.load %arg9[%c6, %c0_13] : memref<18x128xf32, #tpu.memory_space<vmem>>, vector<10x128xf32>
    %23 = arith.truncf %22 : vector<10x128xf32> to vector<10x128xbf16>
    %c0_14 = arith.constant 0 : index
    %c0_15 = arith.constant 0 : index
    %c0_16 = arith.constant 0 : index
    %24 = vector.load %arg4[%c0_14, %c0_15, %c0_16] : memref<3x128x128xbf16, #tpu.memory_space<vmem>>, vector<1x128x128xbf16>
    %25 = vector.shape_cast %24 : vector<1x128x128xbf16> to vector<128x128xbf16>
    %cst = arith.constant dense<0.000000e+00> : vector<10x128xf32>
    %26 = tpu.matmul %23, %25, %cst {dimension_numbers = #tpu.dot_dimension_numbers<[1], [0], [0], [1], [0, 0, 1, 1], [], []>} : vector<10x128xbf16>, vector<128x128xbf16>, vector<10x128xf32> -> vector<10x128xf32>
    %c7 = arith.constant 7 : index
    %c0_17 = arith.constant 0 : index
    %27 = vector.load %arg9[%c7, %c0_17] : memref<18x128xf32, #tpu.memory_space<vmem>>, vector<10x128xf32>
    %28 = arith.truncf %27 : vector<10x128xf32> to vector<10x128xbf16>
    %c1 = arith.constant 1 : index
    %c0_18 = arith.constant 0 : index
    %c0_19 = arith.constant 0 : index
    %29 = vector.load %arg4[%c1, %c0_18, %c0_19] : memref<3x128x128xbf16, #tpu.memory_space<vmem>>, vector<1x128x128xbf16>
    %30 = vector.shape_cast %29 : vector<1x128x128xbf16> to vector<128x128xbf16>
    %cst_20 = arith.constant dense<0.000000e+00> : vector<10x128xf32>
    %31 = tpu.matmul %28, %30, %cst_20 {dimension_numbers = #tpu.dot_dimension_numbers<[1], [0], [0], [1], [0, 0, 1, 1], [], []>} : vector<10x128xbf16>, vector<128x128xbf16>, vector<10x128xf32> -> vector<10x128xf32>
    %32 = arith.addf %26, %31 : vector<10x128xf32>
    %c8_21 = arith.constant 8 : index
    %c0_22 = arith.constant 0 : index
    %33 = vector.load %arg9[%c8_21, %c0_22] : memref<18x128xf32, #tpu.memory_space<vmem>>, vector<10x128xf32>
    %34 = arith.truncf %33 : vector<10x128xf32> to vector<10x128xbf16>
    %c2 = arith.constant 2 : index
    %c0_23 = arith.constant 0 : index
    %c0_24 = arith.constant 0 : index
    %35 = vector.load %arg4[%c2, %c0_23, %c0_24] : memref<3x128x128xbf16, #tpu.memory_space<vmem>>, vector<1x128x128xbf16>
    %36 = vector.shape_cast %35 : vector<1x128x128xbf16> to vector<128x128xbf16>
    %cst_25 = arith.constant dense<0.000000e+00> : vector<10x128xf32>
    %37 = tpu.matmul %34, %36, %cst_25 {dimension_numbers = #tpu.dot_dimension_numbers<[1], [0], [0], [1], [0, 0, 1, 1], [], []>} : vector<10x128xbf16>, vector<128x128xbf16>, vector<10x128xf32> -> vector<10x128xf32>
    %38 = arith.addf %32, %37 : vector<10x128xf32>
    %c0_26 = arith.constant 0 : index
    %c0_27 = arith.constant 0 : index
    %39 = vector.load %arg6[%c0_26, %c0_27] : memref<1x128xf32, #tpu.memory_space<vmem>>, vector<1x128xf32>
    %40 = vector.broadcast %39 : vector<1x128xf32> to vector<10x128xf32>
    %41 = arith.addf %38, %40 : vector<10x128xf32>
    %42 = arith.negf %41 : vector<10x128xf32>
    %43 = math.exp %42 : vector<10x128xf32>
    %cst_28 = arith.constant 1.000000e+00 : f32
    %44 = vector.broadcast %cst_28 : f32 to vector<10x128xf32>
    %45 = arith.addf %44, %43 : vector<10x128xf32>
    %46 = arith.divf %44, %45 : vector<10x128xf32>
    %47 = arith.mulf %41, %46 : vector<10x128xf32>
    %c1_i32_29 = arith.constant 1 : i32
    %48 = arith.subi %0, %c1_i32_29 : i32
    %49 = tpu.iota {dimensions = array<i32: 0>} : vector<10x1xi32>
    %50 = vector.broadcast %48 : i32 to vector<10x1xi32>
    %51 = arith.addi %50, %49 : vector<10x1xi32>
    %c0_i32_30 = arith.constant 0 : i32
    %52 = vector.broadcast %c0_i32_30 : i32 to vector<10x1xi32>
    %53 = arith.cmpi sge, %51, %52 : vector<10x1xi32>
    %c16_i32 = arith.constant 16 : i32
    %54 = vector.broadcast %c16_i32 : i32 to vector<10x1xi32>
    %55 = arith.cmpi slt, %51, %54 : vector<10x1xi32>
    %56 = arith.andi %53, %55 : vector<10x1xi1>
    %cst_31 = arith.constant 0.000000e+00 : f32
    %57 = vector.shape_cast %56 : vector<10x1xi1> to vector<10x1xi1>
    %58 = vector.broadcast %57 : vector<10x1xi1> to vector<10x128xi1>
    %59 = vector.broadcast %cst_31 : f32 to vector<10x128xf32>
    %60 = arith.select %58, %47, %59 : vector<10x128xi1>, vector<10x128xf32>
    %61 = arith.truncf %60 : vector<10x128xf32> to vector<10x128xbf16>
    %62 = vector.extract_strided_slice %61 {offsets = [0, 0], sizes = [8, 128], strides = [1, 1]} : vector<10x128xbf16> to vector<8x128xbf16>
    %c0_32 = arith.constant 0 : index
    %c0_33 = arith.constant 0 : index
    %c0_34 = arith.constant 0 : index
    %63 = vector.load %arg5[%c0_32, %c0_33, %c0_34] : memref<3x128x128xbf16, #tpu.memory_space<vmem>>, vector<1x128x128xbf16>
    %64 = vector.shape_cast %63 : vector<1x128x128xbf16> to vector<128x128xbf16>
    %cst_35 = arith.constant dense<0.000000e+00> : vector<8x128xf32>
    %65 = tpu.matmul %62, %64, %cst_35 {dimension_numbers = #tpu.dot_dimension_numbers<[1], [0], [0], [1], [0, 0, 1, 1], [], []>} : vector<8x128xbf16>, vector<128x128xbf16>, vector<8x128xf32> -> vector<8x128xf32>
    %66 = vector.extract_strided_slice %61 {offsets = [1, 0], sizes = [8, 128], strides = [1, 1]} : vector<10x128xbf16> to vector<8x128xbf16>
    %c1_36 = arith.constant 1 : index
    %c0_37 = arith.constant 0 : index
    %c0_38 = arith.constant 0 : index
    %67 = vector.load %arg5[%c1_36, %c0_37, %c0_38] : memref<3x128x128xbf16, #tpu.memory_space<vmem>>, vector<1x128x128xbf16>
    %68 = vector.shape_cast %67 : vector<1x128x128xbf16> to vector<128x128xbf16>
    %cst_39 = arith.constant dense<0.000000e+00> : vector<8x128xf32>
    %69 = tpu.matmul %66, %68, %cst_39 {dimension_numbers = #tpu.dot_dimension_numbers<[1], [0], [0], [1], [0, 0, 1, 1], [], []>} : vector<8x128xbf16>, vector<128x128xbf16>, vector<8x128xf32> -> vector<8x128xf32>
    %70 = arith.addf %65, %69 : vector<8x128xf32>
    %71 = vector.extract_strided_slice %61 {offsets = [2, 0], sizes = [8, 128], strides = [1, 1]} : vector<10x128xbf16> to vector<8x128xbf16>
    %c2_40 = arith.constant 2 : index
    %c0_41 = arith.constant 0 : index
    %c0_42 = arith.constant 0 : index
    %72 = vector.load %arg5[%c2_40, %c0_41, %c0_42] : memref<3x128x128xbf16, #tpu.memory_space<vmem>>, vector<1x128x128xbf16>
    %73 = vector.shape_cast %72 : vector<1x128x128xbf16> to vector<128x128xbf16>
    %cst_43 = arith.constant dense<0.000000e+00> : vector<8x128xf32>
    %74 = tpu.matmul %71, %73, %cst_43 {dimension_numbers = #tpu.dot_dimension_numbers<[1], [0], [0], [1], [0, 0, 1, 1], [], []>} : vector<8x128xbf16>, vector<128x128xbf16>, vector<8x128xf32> -> vector<8x128xf32>
    %75 = arith.addf %70, %74 : vector<8x128xf32>
    %c0_44 = arith.constant 0 : index
    %c0_45 = arith.constant 0 : index
    %76 = vector.load %arg7[%c0_44, %c0_45] : memref<1x128xf32, #tpu.memory_space<vmem>>, vector<1x128xf32>
    %77 = vector.broadcast %76 : vector<1x128xf32> to vector<8x128xf32>
    %78 = arith.addf %75, %77 : vector<8x128xf32>
    %79 = arith.addf %78, %8 : vector<8x128xf32>
    %80 = arith.negf %79 : vector<8x128xf32>
    %81 = math.exp %80 : vector<8x128xf32>
    %cst_46 = arith.constant 1.000000e+00 : f32
    %82 = vector.broadcast %cst_46 : f32 to vector<8x128xf32>
    %83 = arith.addf %82, %81 : vector<8x128xf32>
    %84 = arith.divf %82, %83 : vector<8x128xf32>
    %85 = arith.mulf %79, %84 : vector<8x128xf32>
    %c0_47 = arith.constant 0 : index
    %c0_48 = arith.constant 0 : index
    %c0_49 = arith.constant 0 : index
    %86 = vector.load %arg8[%c0_47, %c0_48, %c0_49] : memref<1x8x128xf32, #tpu.memory_space<vmem>>, vector<1x8x128xf32>
    %87 = vector.shape_cast %86 : vector<1x8x128xf32> to vector<8x128xf32>
    %88 = vector.shape_cast %85 : vector<8x128xf32> to vector<1x8x128xf32>
    tpu.vector_store %arg8[%c0_47, %c0_48, %c0_49], %88 {strides = array<i32>} : memref<1x8x128xf32, #tpu.memory_space<vmem>>, vector<1x8x128xf32>,
    return
  }
  func.func @transform_0(%arg0: i32, %arg1: i32) -> (i32, i32, i32) {
    %c0_i32 = arith.constant 0 : i32
    %c0_i32_0 = arith.constant 0 : i32
    return %arg0, %arg1, %c0_i32 : i32, i32, i32
  }
  func.func @transform_2(%arg0: i32, %arg1: i32) -> (i32, i32, i32) {
    %c0_i32 = arith.constant 0 : i32
    %c0_i32_0 = arith.constant 0 : i32
    %c0_i32_1 = arith.constant 0 : i32
    %c0_i32_2 = arith.constant 0 : i32
    return %c0_i32, %c0_i32_0, %c0_i32_1 : i32, i32, i32
  }
  func.func @transform_3(%arg0: i32, %arg1: i32) -> (i32, i32, i32) {
    %c0_i32 = arith.constant 0 : i32
    %c0_i32_0 = arith.constant 0 : i32
    %c0_i32_1 = arith.constant 0 : i32
    %c0_i32_2 = arith.constant 0 : i32
    return %c0_i32, %c0_i32_0, %c0_i32_1 : i32, i32, i32
  }
  func.func @transform_4(%arg0: i32, %arg1: i32) -> (i32, i32) {
    %c0_i32 = arith.constant 0 : i32
    %c0_i32_0 = arith.constant 0 : i32
    %c0_i32_1 = arith.constant 0 : i32
    return %c0_i32, %c0_i32_0 : i32, i32
  }
  func.func @transform_5(%arg0: i32, %arg1: i32) -> (i32, i32) {
    %c0_i32 = arith.constant 0 : i32
    %c0_i32_0 = arith.constant 0 : i32
    %c0_i32_1 = arith.constant 0 : i32
    return %c0_i32, %c0_i32_0 : i32, i32
  }
  func.func @transform_6(%arg0: i32, %arg1: i32) -> (i32, i32, i32) {
    %c0_i32 = arith.constant 0 : i32
    %c0_i32_0 = arith.constant 0 : i32
    return %arg0, %arg1, %c0_i32 : i32, i32, i32
  }
}

</mosaic_0001>

<llo_original>
// kernel: residual_block_forward.1
$region0: #{residual_block_forward.1}
  #allocation0 [shape = 'u32[]', space=smem, size = 0x4, offset = 0x4, fixed_abs, tag = 'smem constant byte address 0x4 - core index']
  #allocation1 [shape = 'u32[144,128]{1,0:T(1,128)}', space=vmem, size = 0x12000, scoped, tag = 'internal scratch']
  #allocation2 [shape = 'f32[18,128]{1,0:T(8,128)}', space=vmem, size = 0x3000, scoped, tag = 'scratch operand']
  #allocation3 [shape = 's32[2]{0}', space=sflag, size = 0x8, scoped, tag = 'scratch operand']
  #allocation4 [shape = 's32[]', space=sflag, size = 0x4, offset = 0, fixed_abs, tag = 'sflag constant byte address 0x0 - dummy sync flag']
  #allocation5 [shape = 's32[]', space=sflag, size = 0x4, offset = 0, fixed_abs, tag = 'sflag constant byte address 0x0 - dummy sync flag']
  %s0 = inlined_call_operand.vmem [shape: f32[2,16,128], index: 0, kind: input, shape index: {}, may-alias: {0,1}]
  %s1 = inlined_call_operand.vmem [shape: f32[2,16,128], index: 1, kind: input, shape index: {}, may-alias: {0,1}]
  %s2 = inlined_call_operand.vmem [shape: bf16[3,128,128], index: 2, kind: input, shape index: {}]
  %s3 = inlined_call_operand.vmem [shape: bf16[3,128,128], index: 3, kind: input, shape index: {}]
  %s4 = inlined_call_operand.vmem [shape: f32[1,128], index: 4, kind: input, shape index: {}]
  %s5 = inlined_call_operand.vmem [shape: f32[1,128], index: 5, kind: input, shape index: {}]
  %s6 = inlined_call_operand.vmem [shape: f32[2,16,128], index: 6, kind: output, shape index: {}]
  %s7 = sld [smem:[#allocation0]]
  $region137: #{residual_block_forward.1} parent=0
    _
  %s9 = ssub.s32 1, %s7
  %s10 = scalar_select 0, %s9, %s7
  loop: start=0, step=1, limit=6
  $region2: #{residual_block_forward.1} parent=0 // loop_pre_header
    _
  $region3: #{residual_block_forward.1} parent=0 // loop_header
    %s12 = sphi 0, %s16
    %p13 = scmp.ge.s32.totalorder %s12, 6
    %s19 = sphi 0, %s31
    %s20 = sphi 0, %s27
    %s21 = sphi 0, %s19
    %s22 = sphi 0, %s20
    %s23 = sphi 0, %s21
    %s24 = sphi 0, %s22
    %s36 = sphi 0, %s38
    %s39 = sphi 0, %s36
    %s40 = sphi 0, %s39
    %s56 = sphi 0, %s40
    %s60 = sphi 0, %s60
    %s62 = sphi 0, %s60
    %s63 = sphi 0, %s62
    %s77 = sphi 0, %s63
    %s81 = sphi 0, %s81
    %s83 = sphi 0, %s81
    %s84 = sphi 0, %s83
    %s98 = sphi 0, %s84
    %s102 = sphi 0, %s102
    %s104 = sphi 0, %s102
    %s105 = sphi 0, %s104
    %s119 = sphi 0, %s105
    %s123 = sphi 0, %s123
    %s125 = sphi 0, %s123
    %s126 = sphi 0, %s125
    %s140 = sphi 0, %s126
    %s148 = sphi 0, %s150
    %s151 = sphi 0, %s148
    %s152 = sphi 0, %s151
    %s168 = sphi 0, %s152
  $region4: #{residual_block_forward.1} parent=0 // loop_header_branch
    %15 = sbr.rel (%p13) target = $region8
  $region5: #{residual_block_forward.1} parent=0 // loop_body
    %s17 = ssub.s32 %s12, 1
    %s18 = ssub.s32 %s12, 2
    %s25 = sadd.s32 1, %s20
    %p26 = scmp.ge.s32.totalorder %s25, 2
    %s27 = scalar_select %p26, 0, %s25
    %s28 = sadd.s32 1, %s19
    %s29 = scalar_select %p26, %s28, %s19
    %p30 = scmp.ge.s32.totalorder %s29, 2
    %s31 = scalar_select %p30, 0, %s29
    %s32 = ssub.s32 %s19, %s31
    %s33 = ssub.s32 %s20, %s27
    %s34 = sor.u32 %s32, %s33
    %p35 = scmp.eq.s32.totalorder %s34, 0
    %s37 = sadd.s32 %s36, 1
    %s38 = scalar_select %p35, %s36, %s37
    %p41 = pneg %p35
    %p42 = scmp.eq.s32.totalorder %s12, 3
    %p43 = por %p41, %p42
    %p44 = scmp.ne.s32.totalorder %s36, %s39
    %p45 = scmp.eq.s32.totalorder %s12, 0
    %p46 = por %p44, %p45
    %p47 = scmp.ne.s32.totalorder %s36, %s39
    %p48 = scmp.eq.s32.totalorder %s17, 3
    %p49 = por %p47, %p48
    %p50 = scmp.ne.s32.totalorder %s39, %s40
    %p51 = scmp.eq.s32.totalorder %s17, 0
    %p52 = por %p50, %p51
    %p53 = scmp.ne.s32.totalorder %s39, %s40
    %p54 = scmp.eq.s32.totalorder %s18, 3
    %p55 = por %p53, %p54
    %p57 = scmp.ne.s32.totalorder %s40, %s56
    %p58 = scmp.eq.s32.totalorder %s18, 0
    %p59 = por %p57, %p58
    %s61 = sadd.s32 %s60, 1
    %p64 = scmp.eq.s32.totalorder %s12, 3
    %p65 = scmp.ne.s32.totalorder %s60, %s62
    %p66 = scmp.eq.s32.totalorder %s12, 0
    %p67 = por %p65, %p66
    %p68 = scmp.ne.s32.totalorder %s60, %s62
    %p69 = scmp.eq.s32.totalorder %s17, 3
    %p70 = por %p68, %p69
    %p71 = scmp.ne.s32.totalorder %s62, %s63
    %p72 = scmp.eq.s32.totalorder %s17, 0
    %p73 = por %p71, %p72
    %p74 = scmp.ne.s32.totalorder %s62, %s63
    %p75 = scmp.eq.s32.totalorder %s18, 3
    %p76 = por %p74, %p75
    %p78 = scmp.ne.s32.totalorder %s63, %s77
    %p79 = scmp.eq.s32.totalorder %s18, 0
    %p80 = por %p78, %p79
    %s82 = sadd.s32 %s81, 1
    %p85 = scmp.eq.s32.totalorder %s12, 3
    %p86 = scmp.ne.s32.totalorder %s81, %s83
    %p87 = scmp.eq.s32.totalorder %s12, 0
    %p88 = por %p86, %p87
    %p89 = scmp.ne.s32.totalorder %s81, %s83
    %p90 = scmp.eq.s32.totalorder %s17, 3
    %p91 = por %p89, %p90
    %p92 = scmp.ne.s32.totalorder %s83, %s84
    %p93 = scmp.eq.s32.totalorder %s17, 0
    %p94 = por %p92, %p93
    %p95 = scmp.ne.s32.totalorder %s83, %s84
    %p96 = scmp.eq.s32.totalorder %s18, 3
    %p97 = por %p95, %p96
    %p99 = scmp.ne.s32.totalorder %s84, %s98
    %p100 = scmp.eq.s32.totalorder %s18, 0
    %p101 = por %p99, %p100
    %s103 = sadd.s32 %s102, 1
    %p106 = scmp.eq.s32.totalorder %s12, 3
    %p107 = scmp.ne.s32.totalorder %s102, %s104
    %p108 = scmp.eq.s32.totalorder %s12, 0
    %p109 = por %p107, %p108
    %p110 = scmp.ne.s32.totalorder %s102, %s104
    %p111 = scmp.eq.s32.totalorder %s17, 3
    %p112 = por %p110, %p111
    %p113 = scmp.ne.s32.totalorder %s104, %s105
    %p114 = scmp.eq.s32.totalorder %s17, 0
    %p115 = por %p113, %p114
    %p116 = scmp.ne.s32.totalorder %s104, %s105
    %p117 = scmp.eq.s32.totalorder %s18, 3
    %p118 = por %p116, %p117
    %p120 = scmp.ne.s32.totalorder %s105, %s119
    %p121 = scmp.eq.s32.totalorder %s18, 0
    %p122 = por %p120, %p121
    %s124 = sadd.s32 %s123, 1
    %p127 = scmp.eq.s32.totalorder %s12, 3
    %p128 = scmp.ne.s32.totalorder %s123, %s125
    %p129 = scmp.eq.s32.totalorder %s12, 0
    %p130 = por %p128, %p129
    %p131 = scmp.ne.s32.totalorder %s123, %s125
    %p132 = scmp.eq.s32.totalorder %s17, 3
    %p133 = por %p131, %p132
    %p134 = scmp.ne.s32.totalorder %s125, %s126
    %p135 = scmp.eq.s32.totalorder %s17, 0
    %p136 = por %p134, %p135
    %p137 = scmp.ne.s32.totalorder %s125, %s126
    %p138 = scmp.eq.s32.totalorder %s18, 3
    %p139 = por %p137, %p138
    %p141 = scmp.ne.s32.totalorder %s126, %s140
    %p142 = scmp.eq.s32.totalorder %s18, 0
    %p143 = por %p141, %p142
    %s144 = ssub.s32 %s19, %s31
    %s145 = ssub.s32 %s20, %s27
    %s146 = sor.u32 %s144, %s145
    %p147 = scmp.eq.s32.totalorder %s146, 0
    %s149 = sadd.s32 %s148, 1
    %s150 = scalar_select %p147, %s148, %s149
    %p153 = pneg %p147
    %p154 = scmp.eq.s32.totalorder %s12, 3
    %p155 = por %p153, %p154
    %p156 = scmp.ne.s32.totalorder %s148, %s151
    %p157 = scmp.eq.s32.totalorder %s12, 0
    %p158 = por %p156, %p157
    %p159 = scmp.ne.s32.totalorder %s148, %s151
    %p160 = scmp.eq.s32.totalorder %s17, 3
    %p161 = por %p159, %p160
    %p162 = scmp.ne.s32.totalorder %s151, %s152
    %p163 = scmp.eq.s32.totalorder %s17, 0
    %p164 = por %p162, %p163
    %p165 = scmp.ne.s32.totalorder %s151, %s152
    %p166 = scmp.eq.s32.totalorder %s18, 3
    %p167 = por %p165, %p166
    %p169 = scmp.ne.s32.totalorder %s152, %s168
    %p170 = scmp.eq.s32.totalorder %s18, 0
    %p171 = por %p169, %p170
    %p172 = scmp.le.s32.totalorder 1, %s12
    %p173 = scmp.lt.s32.totalorder %s12, 5
    %p174 = pnand %p172, %p173
    %p175 = pneg %p174
    // Predicated region
    $region9: #{residual_block_forward.1} parent=5 // pred_check
      _
    $region10: #{residual_block_forward.1} parent=5 // pred_check_branch
      %177 = sbr.rel (%p174) target = $region12
    $region11: #{residual_block_forward.1} parent=5 // pred_region
      %s178 = ssub.s32 %s12, 1
      // Predicated region
      $region13: #{residual_block_forward.1} parent=11 // pred_check
        %p179 = pneg %p73
      $region14: #{residual_block_forward.1} parent=11 // pred_check_branch
        %181 = sbr.rel (%p179) target = $region16
      $region15: #{residual_block_forward.1} parent=11 // pred_region
        _
      $region16: #{residual_block_forward.1} parent=11 // pred_fallthru
        _
      // Predicated region
      $region17: #{residual_block_forward.1} parent=11 // pred_check
        %p182 = pneg %p94
      $region18: #{residual_block_forward.1} parent=11 // pred_check_branch
        %184 = sbr.rel (%p182) target = $region20
      $region19: #{residual_block_forward.1} parent=11 // pred_region
        _
      $region20: #{residual_block_forward.1} parent=11 // pred_fallthru
        _
      // Predicated region
      $region21: #{residual_block_forward.1} parent=11 // pred_check
        %p185 = pneg %p115
      $region22: #{residual_block_forward.1} parent=11 // pred_check_branch
        %187 = sbr.rel (%p185) target = $region24
      $region23: #{residual_block_forward.1} parent=11 // pred_region
        _
      $region24: #{residual_block_forward.1} parent=11 // pred_fallthru
        _
      // Predicated region
      $region25: #{residual_block_forward.1} parent=11 // pred_check
        %p188 = pneg %p136
      $region26: #{residual_block_forward.1} parent=11 // pred_check_branch
        %190 = sbr.rel (%p188) target = $region28
      $region27: #{residual_block_forward.1} parent=11 // pred_region
        _
      $region28: #{residual_block_forward.1} parent=11 // pred_fallthru
        _
    $region12: #{residual_block_forward.1} parent=5 // pred_fallthru
      _
    %p191 = scmp.lt.s32.totalorder %s12, 4
    // Predicated region
    $region29: #{residual_block_forward.1} parent=5 // pred_check
      %p192 = pneg %p191
    $region30: #{residual_block_forward.1} parent=5 // pred_check_branch
      %194 = sbr.rel (%p192) target = $region32
    $region31: #{residual_block_forward.1} parent=5 // pred_region
      // Predicated region
      $region33: #{residual_block_forward.1} parent=31 // pred_check
        %p195 = pneg %p46
      $region34: #{residual_block_forward.1} parent=31 // pred_check_branch
        %197 = sbr.rel (%p195) target = $region36
      $region35: #{residual_block_forward.1} parent=31 // pred_region
        %p198 = scmp.lt.s32.totalorder %s19, 1
        %s199 = scalar_select %p198, %s19, 1
        %p200 = scmp.lt.s32.totalorder %s20, 1
        %s201 = scalar_select %p200, %s20, 1
        %s202 = smul.addr %s199, 2
        %s203 = sadd.s32 %s201, %s202
        %s204 = smul.addr %s203, 8
        %s205 = scalar_lea.vmem %s0, %s204
      $region36: #{residual_block_forward.1} parent=31 // pred_fallthru
        _
    $region32: #{residual_block_forward.1} parent=5 // pred_fallthru
      _
    %p206 = scmp.le.s32.totalorder 1, %s12
    %p207 = scmp.lt.s32.totalorder %s12, 5
    %p208 = pnand %p206, %p207
    %p209 = pneg %p208
    // Predicated region
    $region37: #{residual_block_forward.1} parent=5 // pred_check
      _
    $region38: #{residual_block_forward.1} parent=5 // pred_check_branch
      %211 = sbr.rel (%p208) target = $region40
    $region39: #{residual_block_forward.1} parent=5 // pred_region
      %s212 = ssub.s32 %s12, 1
      %p213 = scmp.lt.s32.totalorder %s21, 1
      %s214 = scalar_select %p213, %s21, 1
      %p215 = scmp.lt.s32.totalorder %s22, 1
      %s216 = scalar_select %p215, %s22, 1
      %s217 = smul.addr %s214, 2
      %s218 = sadd.s32 %s216, %s217
      %s219 = smul.addr %s218, 8
      %s220 = scalar_lea.vmem %s0, %s219
      %p221 = pneg %p52
      %p222 = pneg %p49
      %p223 = pneg %p73
      %p224 = pneg %p70
      %p225 = pneg %p94
      %p226 = pneg %p91
      %p227 = pneg %p115
      %p228 = pneg %p112
      %p229 = pneg %p136
      %p230 = pneg %p133
      %p231 = pneg %p164
      %p232 = pneg %p161
      %p233 = scmp.lt.s32.totalorder %s21, 1
      %s234 = scalar_select %p233, %s21, 1
      %p235 = scmp.lt.s32.totalorder %s22, 1
      %s236 = scalar_select %p235, %s22, 1
      %s237 = smul.addr %s234, 2
      %s238 = sadd.s32 %s236, %s237
      %s239 = smul.addr %s238, 8
      %s240 = scalar_lea.vmem %s6, %s239
      %p241 = scmp.lt.s32.totalorder %s21, 1
      %s242 = scalar_select %p241, %s21, 1
      %p243 = scmp.lt.s32.totalorder %s22, 1
      %s244 = scalar_select %p243, %s22, 1
      %s245 = smul.addr %s242, 2
      %s246 = sadd.s32 %s244, %s245
      %s247 = smul.addr %s246, 8
      %s248 = scalar_lea.vmem %s0, %s247
      %p249 = scmp.lt.s32.totalorder %s21, 1
      %s250 = scalar_select %p249, %s21, 1
      %p251 = scmp.lt.s32.totalorder %s22, 1
      %s252 = scalar_select %p251, %s22, 1
      %s253 = smul.addr %s250, 2
      %s254 = sadd.s32 %s252, %s253
      %s255 = smul.addr %s254, 8
      %s256 = scalar_lea.vmem %s6, %s255
      %s258 = smul.u32 %s22, 8
      %p259 = scmp.gt.s32.totalorder %s22, 0
      // Predicated region
      $region41: #{residual_block_forward.1} parent=39 // pred_check
        %p260 = pneg %p259
      $region42: #{residual_block_forward.1} parent=39 // pred_check_branch
        %262 = sbr.rel (%p260) target = $region44
      $region43: #{residual_block_forward.1} parent=39 // pred_region
        %s263 = ssub.s32 %s258, 2
        %s264 = smul.u32 %s21, 16
        %s265 = sadd.s32 %s263, %s264
        %s266 = scalar_lea.vmem %s1, %s265
        %s267 = scalar_lea.vmem [#allocation2], 6
        %p269 = scmp.lt.u32.totalorder 2, 8
        %p270 = pneg %p269
        // Predicated region
        $region45: #{residual_block_forward.1} parent=43 // pred_check
          _
        $region46: #{residual_block_forward.1} parent=43 // pred_check_branch
          %272 = sbr.rel (%p269) target = $region48
        $region47: #{residual_block_forward.1} parent=43 // pred_region
          %s288 = sand.u32 2, 7
          %p289 = scmp.eq.s32.totalorder %s288, 0
          %p290 = pneg %p289
          // Predicated region
          $region60: #{residual_block_forward.1} parent=47 // pred_check
            _
          $region61: #{residual_block_forward.1} parent=47 // pred_check_branch
            %292 = sbr.rel (%p289) target = $region63
          $region62: #{residual_block_forward.1} parent=47 // pred_region
            %s293 = sand.u32 2, 7
            %s294 = ssub.s32 2, %s293
            %s295 = scalar_lea.vmem %s266, %s294
            %s296 = ssub.s32 2, %s293
            %s297 = scalar_lea.vmem %s267, %s296 [#allocation2]
            %s298 = sshll.u32 1, %s293
            %s299 = ssub.s32 %s298, 1
            loop: start=0, step=1, limit=1
            $region64: #{residual_block_forward.1} parent=62 // loop_pre_header
              _
            $region65: #{residual_block_forward.1} parent=62 // loop_header
              %s301 = sphi 0, %s305
              %p302 = scmp.ge.s32.totalorder %s301, 1
              %s306 = sphi %s295, %s295
              %s307 = sphi %s297, %s297
            $region66: #{residual_block_forward.1} parent=62 // loop_header_branch
              %304 = sbr.rel (%p302) target = $region70
            $region67: #{residual_block_forward.1} parent=62 // loop_body
              %v308 = vld [vmem:[%s306] sm:%s299]
              %309 = vst [vmem:[%s307] sm:%s299] %v308
            $region68: #{residual_block_forward.1} parent=62 // loop_footer
              %s305 = sadd.s32 1, %s301
            $region69: #{residual_block_forward.1} parent=62 // loop_footer_branch
              %300 = sbr.rel target = $region65
            $region70: #{residual_block_forward.1} parent=62 // loop_exit
              _
          $region63: #{residual_block_forward.1} parent=47 // pred_fallthru
            _
        $region48: #{residual_block_forward.1} parent=43 // pred_fallthru
          _
        // Predicated region
        $region49: #{residual_block_forward.1} parent=43 // pred_check
          %p273 = pneg %p269
        $region50: #{residual_block_forward.1} parent=43 // pred_check_branch
          %275 = sbr.rel (%p273) target = $region52
        $region51: #{residual_block_forward.1} parent=43 // pred_region
          %s276 = sshll.u32 1, 2
          %s277 = ssub.s32 %s276, 1
          loop: start=0, step=1, limit=1
          $region53: #{residual_block_forward.1} parent=51 // loop_pre_header
            _
          $region54: #{residual_block_forward.1} parent=51 // loop_header
            %s279 = sphi 0, %s283
            %p280 = scmp.ge.s32.totalorder %s279, 1
            %s284 = sphi %s266, %s266
            %s285 = sphi %s267, %s267
          $region55: #{residual_block_forward.1} parent=51 // loop_header_branch
            %282 = sbr.rel (%p280) target = $region59
          $region56: #{residual_block_forward.1} parent=51 // loop_body
            %v286 = vld [vmem:[%s284] sm:%s277]
            %287 = vst [vmem:[%s285] sm:%s277] %v286
          $region57: #{residual_block_forward.1} parent=51 // loop_footer
            %s283 = sadd.s32 1, %s279
          $region58: #{residual_block_forward.1} parent=51 // loop_footer_branch
            %278 = sbr.rel target = $region54
          $region59: #{residual_block_forward.1} parent=51 // loop_exit
            _
        $region52: #{residual_block_forward.1} parent=43 // pred_fallthru
          _
        // Predicated region
        $region71: #{residual_block_forward.1} parent=43 // pred_check
          _
        $region72: #{residual_block_forward.1} parent=43 // pred_check_branch
          %312 = sbr.rel (0) target = $region74
        $region73: #{residual_block_forward.1} parent=43 // pred_region
          %313 = vsyncadd [#allocation3], 32
        $region74: #{residual_block_forward.1} parent=43 // pred_fallthru
          _
      $region44: #{residual_block_forward.1} parent=39 // pred_fallthru
        _
      %p314 = scmp.lt.s32.totalorder %s22, 1
      // Predicated region
      $region75: #{residual_block_forward.1} parent=39 // pred_check
        %p315 = pneg %p314
      $region76: #{residual_block_forward.1} parent=39 // pred_check_branch
        %317 = sbr.rel (%p315) target = $region78
      $region77: #{residual_block_forward.1} parent=39 // pred_region
        %s318 = sadd.s32 %s258, 8
        %s319 = smul.u32 %s21, 16
        %s320 = sadd.s32 %s318, %s319
        %s321 = scalar_lea.vmem %s1, %s320
        %s322 = scalar_lea.vmem [#allocation2], 16
        %s323 = scalar_lea.sflag [#allocation3], 1
        %p325 = scmp.lt.u32.totalorder 2, 8
        %p326 = pneg %p325
        // Predicated region
        $region79: #{residual_block_forward.1} parent=77 // pred_check
          _
        $region80: #{residual_block_forward.1} parent=77 // pred_check_branch
          %328 = sbr.rel (%p325) target = $region82
        $region81: #{residual_block_forward.1} parent=77 // pred_region
          %s344 = sand.u32 2, 7
          %p345 = scmp.eq.s32.totalorder %s344, 0
          %p346 = pneg %p345
          // Predicated region
          $region94: #{residual_block_forward.1} parent=81 // pred_check
            _
          $region95: #{residual_block_forward.1} parent=81 // pred_check_branch
            %348 = sbr.rel (%p345) target = $region97
          $region96: #{residual_block_forward.1} parent=81 // pred_region
            %s349 = sand.u32 2, 7
            %s350 = ssub.s32 2, %s349
            %s351 = scalar_lea.vmem %s321, %s350
            %s352 = ssub.s32 2, %s349
            %s353 = scalar_lea.vmem %s322, %s352 [#allocation2]
            %s354 = sshll.u32 1, %s349
            %s355 = ssub.s32 %s354, 1
            loop: start=0, step=1, limit=1
            $region98: #{residual_block_forward.1} parent=96 // loop_pre_header
              _
            $region99: #{residual_block_forward.1} parent=96 // loop_header
              %s357 = sphi 0, %s361
              %p358 = scmp.ge.s32.totalorder %s357, 1
              %s362 = sphi %s351, %s351
              %s363 = sphi %s353, %s353
            $region100: #{residual_block_forward.1} parent=96 // loop_header_branch
              %360 = sbr.rel (%p358) target = $region104
            $region101: #{residual_block_forward.1} parent=96 // loop_body
              %v364 = vld [vmem:[%s362] sm:%s355]
              %365 = vst [vmem:[%s363] sm:%s355] %v364
            $region102: #{residual_block_forward.1} parent=96 // loop_footer
              %s361 = sadd.s32 1, %s357
            $region103: #{residual_block_forward.1} parent=96 // loop_footer_branch
              %356 = sbr.rel target = $region99
            $region104: #{residual_block_forward.1} parent=96 // loop_exit
              _
          $region97: #{residual_block_forward.1} parent=81 // pred_fallthru
            _
        $region82: #{residual_block_forward.1} parent=77 // pred_fallthru
          _
        // Predicated region
        $region83: #{residual_block_forward.1} parent=77 // pred_check
          %p329 = pneg %p325
        $region84: #{residual_block_forward.1} parent=77 // pred_check_branch
          %331 = sbr.rel (%p329) target = $region86
        $region85: #{residual_block_forward.1} parent=77 // pred_region
          %s332 = sshll.u32 1, 2
          %s333 = ssub.s32 %s332, 1
          loop: start=0, step=1, limit=1
          $region87: #{residual_block_forward.1} parent=85 // loop_pre_header
            _
          $region88: #{residual_block_forward.1} parent=85 // loop_header
            %s335 = sphi 0, %s339
            %p336 = scmp.ge.s32.totalorder %s335, 1
            %s340 = sphi %s321, %s321
            %s341 = sphi %s322, %s322
          $region89: #{residual_block_forward.1} parent=85 // loop_header_branch
            %338 = sbr.rel (%p336) target = $region93
          $region90: #{residual_block_forward.1} parent=85 // loop_body
            %v342 = vld [vmem:[%s340] sm:%s333]
            %343 = vst [vmem:[%s341] sm:%s333] %v342
          $region91: #{residual_block_forward.1} parent=85 // loop_footer
            %s339 = sadd.s32 1, %s335
          $region92: #{residual_block_forward.1} parent=85 // loop_footer_branch
            %334 = sbr.rel target = $region88
          $region93: #{residual_block_forward.1} parent=85 // loop_exit
            _
        $region86: #{residual_block_forward.1} parent=77 // pred_fallthru
          _
        // Predicated region
        $region105: #{residual_block_forward.1} parent=77 // pred_check
          _
        $region106: #{residual_block_forward.1} parent=77 // pred_check_branch
          %368 = sbr.rel (0) target = $region108
        $region107: #{residual_block_forward.1} parent=77 // pred_region
          %369 = vsyncadd %s323, 32
        $region108: #{residual_block_forward.1} parent=77 // pred_fallthru
          _
      $region78: #{residual_block_forward.1} parent=39 // pred_fallthru
        _
      %v370 = vld [vmem:[%s248] sm:$0xff]
      %371 = vst [vmem:[#allocation2 + $0x8] sm:$0xff] %v370
      %p372 = scmp.eq.s32.totalorder %s22, 0
      // Predicated region
      $region109: #{residual_block_forward.1} parent=39 // pred_check
        %p373 = pneg %p372
      $region110: #{residual_block_forward.1} parent=39 // pred_check_branch
        %375 = sbr.rel (%p373) target = $region112
      $region111: #{residual_block_forward.1} parent=39 // pred_region
        %376 = vst [vmem:[#allocation2 + $0x6] sm:$0x3] 0.0
      $region112: #{residual_block_forward.1} parent=39 // pred_fallthru
        _
      %p377 = scmp.eq.s32.totalorder %s22, 1
      // Predicated region
      $region113: #{residual_block_forward.1} parent=39 // pred_check
        %p378 = pneg %p377
      $region114: #{residual_block_forward.1} parent=39 // pred_check_branch
        %380 = sbr.rel (%p378) target = $region116
      $region115: #{residual_block_forward.1} parent=39 // pred_region
        %381 = vst [vmem:[#allocation2 + $0x10] sm:$0x3] 0.0
      $region116: #{residual_block_forward.1} parent=39 // pred_fallthru
        _
      // Predicated region
      $region117: #{residual_block_forward.1} parent=39 // pred_check
        %p382 = pneg %p259
      $region118: #{residual_block_forward.1} parent=39 // pred_check_branch
        %384 = sbr.rel (%p382) target = $region120
      $region119: #{residual_block_forward.1} parent=39 // pred_region
        %s385 = smul.u32 2, 1
        %s386 = sshll.u32 %s385, 4
        %387 = dma.done [#allocation3], %s386
      $region120: #{residual_block_forward.1} parent=39 // pred_fallthru
        _
      // Predicated region
      $region121: #{residual_block_forward.1} parent=39 // pred_check
        %p388 = pneg %p314
      $region122: #{residual_block_forward.1} parent=39 // pred_check_branch
        %390 = sbr.rel (%p388) target = $region124
      $region123: #{residual_block_forward.1} parent=39 // pred_region
        %s391 = scalar_lea.sflag [#allocation3], 1
        %s392 = smul.u32 2, 1
        %s393 = sshll.u32 %s392, 4
        %394 = dma.done %s391, %s393
      $region124: #{residual_block_forward.1} parent=39 // pred_fallthru
        _
      %v395 = vld [vmem:[#allocation2 + $0x6] sm:$0xff]
      %v396 = vld [vmem:[#allocation2 + $0xe] sm:$0x3]
      %v397 = vpack.c.bf16 %v396, %v395
      %v398 = vld [vmem:[%s2] sm:$0xf]
      %v399 = vld [vmem:[%s2 + $0x4] sm:$0xf]
      %v400 = vld [vmem:[%s2 + $0x8] sm:$0xf]
      %v401 = vld [vmem:[%s2 + $0xc] sm:$0xf]
      %v402 = vld [vmem:[%s2 + $0x10] sm:$0xf]
      %v403 = vld [vmem:[%s2 + $0x14] sm:$0xf]
      %v404 = vld [vmem:[%s2 + $0x18] sm:$0xf]
      %v405 = vld [vmem:[%s2 + $0x1c] sm:$0xf]
      %v406 = vld [vmem:[%s2 + $0x20] sm:$0xf]
      %v407 = vld [vmem:[%s2 + $0x24] sm:$0xf]
      %v408 = vld [vmem:[%s2 + $0x28] sm:$0xf]
      %v409 = vld [vmem:[%s2 + $0x2c] sm:$0xf]
      %v410 = vld [vmem:[%s2 + $0x30] sm:$0xf]
      %v411 = vld [vmem:[%s2 + $0x34] sm:$0xf]
      %v412 = vld [vmem:[%s2 + $0x38] sm:$0xf]
      %v413 = vld [vmem:[%s2 + $0x3c] sm:$0xf]
      %v414 = vld [vmem:[#allocation2 + $0x7] sm:$0xff]
      %v415 = vld [vmem:[#allocation2 + $0xf] sm:$0x3]
      %v416 = vpack.c.bf16 %v415, %v414
      %s417 = scalar_lea.vmem %s2, 64
      %v418 = vld [vmem:[%s417] sm:$0xf]
      %v419 = vld [vmem:[%s417 + $0x4] sm:$0xf]
      %v420 = vld [vmem:[%s417 + $0x8] sm:$0xf]
      %v421 = vld [vmem:[%s417 + $0xc] sm:$0xf]
      %v422 = vld [vmem:[%s417 + $0x10] sm:$0xf]
      %v423 = vld [vmem:[%s417 + $0x14] sm:$0xf]
      %v424 = vld [vmem:[%s417 + $0x18] sm:$0xf]
      %v425 = vld [vmem:[%s417 + $0x1c] sm:$0xf]
      %v426 = vld [vmem:[%s417 + $0x20] sm:$0xf]
      %v427 = vld [vmem:[%s417 + $0x24] sm:$0xf]
      %v428 = vld [vmem:[%s417 + $0x28] sm:$0xf]
      %v429 = vld [vmem:[%s417 + $0x2c] sm:$0xf]
      %v430 = vld [vmem:[%s417 + $0x30] sm:$0xf]
      %v431 = vld [vmem:[%s417 + $0x34] sm:$0xf]
      %v432 = vld [vmem:[%s417 + $0x38] sm:$0xf]
      %v433 = vld [vmem:[%s417 + $0x3c] sm:$0xf]
      %v450 = vunpack.c.l.b16 %v418
      %v451 = vunpack.c.l.b16 %v419
      %v452 = vunpack.c.l.b16 %v420
      %v453 = vunpack.c.l.b16 %v421
      %v454 = vunpack.c.l.b16 %v422
      %v455 = vunpack.c.l.b16 %v423
      %v456 = vunpack.c.l.b16 %v424
      %v457 = vunpack.c.l.b16 %v425
      %v458 = vunpack.c.l.b16 %v426
      %v459 = vunpack.c.l.b16 %v427
      %v460 = vunpack.c.l.b16 %v428
      %v461 = vunpack.c.l.b16 %v429
      %v462 = vunpack.c.l.b16 %v430
      %v463 = vunpack.c.l.b16 %v431
      %v464 = vunpack.c.l.b16 %v432
      %v465 = vunpack.c.l.b16 %v433
      %v466 = vpack.c.b16 %v451, %v450
      %v467 = vpack.c.b16 %v453, %v452
      %v468 = vpack.c.b16 %v455, %v454
      %v469 = vpack.c.b16 %v457, %v456
      %v470 = vpack.c.b16 %v459, %v458
      %v471 = vpack.c.b16 %v461, %v460
      %v472 = vpack.c.b16 %v463, %v462
      %v473 = vpack.c.b16 %v465, %v464
      %482 = vmatprep.subr.bf16.mxu0 0
      %483 = vmatpush1.bf16.msra.mxu0 %v473
      %484 = vmatprep.subr.bf16.mxu0 0
      %485 = vmatpush1.bf16.msra.mxu0 %v472
      %486 = vmatprep.subr.bf16.mxu0 0
      %487 = vmatpush1.bf16.msra.mxu0 %v471
      %488 = vmatprep.subr.bf16.mxu0 0
      %489 = vmatpush1.bf16.msra.mxu0 %v470
      %490 = vmatprep.subr.bf16.mxu0 0
      %491 = vmatpush1.bf16.msra.mxu0 %v469
      %492 = vmatprep.subr.bf16.mxu0 0
      %493 = vmatpush1.bf16.msra.mxu0 %v468
      %494 = vmatprep.subr.bf16.mxu0 0
      %495 = vmatpush1.bf16.msra.mxu0 %v467
      %496 = vmatprep.subr.bf16.mxu0 0
      %497 = vmatpush1.bf16.msra.mxu0 %v466
      %498 = vmatprep.subr.bf16.mxu0 0
      %499 = vmatpush2.bf16.msra.mxu0 0
      %500 = vmatprep.subr.bf16.mxu0 0
      %501 = vmatpush2.bf16.msra.mxu0 0
      %502 = vmatprep.subr.bf16.mxu0 0
      %503 = vmatpush2.bf16.msra.mxu0 0
      %504 = vmatprep.subr.bf16.mxu0 0
      %505 = vmatpush2.bf16.msra.mxu0 0
      %506 = vmatprep.subr.bf16.mxu0 0
      %507 = vmatpush2.bf16.msra.mxu0 0
      %508 = vmatprep.subr.bf16.mxu0 0
      %509 = vmatpush2.bf16.msra.mxu0 0
      %510 = vmatprep.subr.bf16.mxu0 0
      %511 = vmatpush2.bf16.msra.mxu0 0
      %512 = vmatprep.subr.bf16.mxu0 0
      %513 = vmatpush2.bf16.msra.mxu0 0
      %514 = vmatprep.mubr.bf16.mxu0 0
      %515 = vmatmul.mubr.bf16.gmra.mxu0 %v416
      %v516 = vpop.f32.mrf.mxu0
      %v517 = vadd.f32 0.0, %v516
      %v518 = vpop.f32.mrf.mxu0
      %v519 = vpop.f32.mrf.mxu0
      %v520 = vadd.f32 0.0, %v519
      %v521 = vpop.f32.mrf.mxu0
      %522 = vdwg.mxu0
      %v539 = vunpack.c.l.b16 %v398
      %v540 = vunpack.c.l.b16 %v399
      %v541 = vunpack.c.l.b16 %v400
      %v542 = vunpack.c.l.b16 %v401
      %v543 = vunpack.c.l.b16 %v402
      %v544 = vunpack.c.l.b16 %v403
      %v545 = vunpack.c.l.b16 %v404
      %v546 = vunpack.c.l.b16 %v405
      %v547 = vunpack.c.l.b16 %v406
      %v548 = vunpack.c.l.b16 %v407
      %v549 = vunpack.c.l.b16 %v408
      %v550 = vunpack.c.l.b16 %v409
      %v551 = vunpack.c.l.b16 %v410
      %v552 = vunpack.c.l.b16 %v411
      %v553 = vunpack.c.l.b16 %v412
      %v554 = vunpack.c.l.b16 %v413
      %v555 = vpack.c.b16 %v540, %v539
      %v556 = vpack.c.b16 %v542, %v541
      %v557 = vpack.c.b16 %v544, %v543
      %v558 = vpack.c.b16 %v546, %v545
      %v559 = vpack.c.b16 %v548, %v547
      %v560 = vpack.c.b16 %v550, %v549
      %v561 = vpack.c.b16 %v552, %v551
      %v562 = vpack.c.b16 %v554, %v553
      %571 = vmatprep.subr.bf16.mxu0 0
      %572 = vmatpush1.bf16.msra.mxu0 %v562
      %573 = vmatprep.subr.bf16.mxu0 0
      %574 = vmatpush1.bf16.msra.mxu0 %v561
      %575 = vmatprep.subr.bf16.mxu0 0
      %576 = vmatpush1.bf16.msra.mxu0 %v560
      %577 = vmatprep.subr.bf16.mxu0 0
      %578 = vmatpush1.bf16.msra.mxu0 %v559
      %579 = vmatprep.subr.bf16.mxu0 0
      %580 = vmatpush1.bf16.msra.mxu0 %v558
      %581 = vmatprep.subr.bf16.mxu0 0
      %582 = vmatpush1.bf16.msra.mxu0 %v557
      %583 = vmatprep.subr.bf16.mxu0 0
      %584 = vmatpush1.bf16.msra.mxu0 %v556
      %585 = vmatprep.subr.bf16.mxu0 0
      %586 = vmatpush1.bf16.msra.mxu0 %v555
      %587 = vmatprep.subr.bf16.mxu0 0
      %588 = vmatpush2.bf16.msra.mxu0 0
      %589 = vmatprep.subr.bf16.mxu0 0
      %590 = vmatpush2.bf16.msra.mxu0 0
      %591 = vmatprep.subr.bf16.mxu0 0
      %592 = vmatpush2.bf16.msra.mxu0 0
      %593 = vmatprep.subr.bf16.mxu0 0
      %594 = vmatpush2.bf16.msra.mxu0 0
      %595 = vmatprep.subr.bf16.mxu0 0
      %596 = vmatpush2.bf16.msra.mxu0 0
      %597 = vmatprep.subr.bf16.mxu0 0
      %598 = vmatpush2.bf16.msra.mxu0 0
      %599 = vmatprep.subr.bf16.mxu0 0
      %600 = vmatpush2.bf16.msra.mxu0 0
      %601 = vmatprep.subr.bf16.mxu0 0
      %602 = vmatpush2.bf16.msra.mxu0 0
      %603 = vmatprep.mubr.bf16.mxu0 0
      %604 = vmatmul.mubr.bf16.gmra.mxu0 %v397
      %v605 = vpop.f32.mrf.mxu0
      %v606 = vadd.f32 %v517, %v605
      %v607 = vpop.f32.mrf.mxu0
      %v608 = vpop.f32.mrf.mxu0
      %v609 = vadd.f32 %v520, %v608
      %v610 = vpop.f32.mrf.mxu0
      %611 = vdwg.mxu0
      %v612 = vld [vmem:[#allocation2 + $0x8] sm:$0xff]
      %v613 = vld [vmem:[#allocation2 + $0x10] sm:$0x3]
      %v614 = vpack.c.bf16 %v613, %v612
      %s615 = scalar_lea.vmem %s2, 128
      %v616 = vld [vmem:[%s615] sm:$0xf]
      %v617 = vld [vmem:[%s615 + $0x4] sm:$0xf]
      %v618 = vld [vmem:[%s615 + $0x8] sm:$0xf]
      %v619 = vld [vmem:[%s615 + $0xc] sm:$0xf]
      %v620 = vld [vmem:[%s615 + $0x10] sm:$0xf]
      %v621 = vld [vmem:[%s615 + $0x14] sm:$0xf]
      %v622 = vld [vmem:[%s615 + $0x18] sm:$0xf]
      %v623 = vld [vmem:[%s615 + $0x1c] sm:$0xf]
      %v624 = vld [vmem:[%s615 + $0x20] sm:$0xf]
      %v625 = vld [vmem:[%s615 + $0x24] sm:$0xf]
      %v626 = vld [vmem:[%s615 + $0x28] sm:$0xf]
      %v627 = vld [vmem:[%s615 + $0x2c] sm:$0xf]
      %v628 = vld [vmem:[%s615 + $0x30] sm:$0xf]
      %v629 = vld [vmem:[%s615 + $0x34] sm:$0xf]
      %v630 = vld [vmem:[%s615 + $0x38] sm:$0xf]
      %v631 = vld [vmem:[%s615 + $0x3c] sm:$0xf]
      %v648 = vunpack.c.l.b16 %v616
      %v649 = vunpack.c.l.b16 %v617
      %v650 = vunpack.c.l.b16 %v618
      %v651 = vunpack.c.l.b16 %v619
      %v652 = vunpack.c.l.b16 %v620
      %v653 = vunpack.c.l.b16 %v621
      %v654 = vunpack.c.l.b16 %v622
      %v655 = vunpack.c.l.b16 %v623
      %v656 = vunpack.c.l.b16 %v624
      %v657 = vunpack.c.l.b16 %v625
      %v658 = vunpack.c.l.b16 %v626
      %v659 = vunpack.c.l.b16 %v627
      %v660 = vunpack.c.l.b16 %v628
      %v661 = vunpack.c.l.b16 %v629
      %v662 = vunpack.c.l.b16 %v630
      %v663 = vunpack.c.l.b16 %v631
      %v664 = vpack.c.b16 %v649, %v648
      %v665 = vpack.c.b16 %v651, %v650
      %v666 = vpack.c.b16 %v653, %v652
      %v667 = vpack.c.b16 %v655, %v654
      %v668 = vpack.c.b16 %v657, %v656
      %v669 = vpack.c.b16 %v659, %v658
      %v670 = vpack.c.b16 %v661, %v660
      %v671 = vpack.c.b16 %v663, %v662
      %680 = vmatprep.subr.bf16.mxu0 0
      %681 = vmatpush1.bf16.msra.mxu0 %v671
      %682 = vmatprep.subr.bf16.mxu0 0
      %683 = vmatpush1.bf16.msra.mxu0 %v670
      %684 = vmatprep.subr.bf16.mxu0 0
      %685 = vmatpush1.bf16.msra.mxu0 %v669
      %686 = vmatprep.subr.bf16.mxu0 0
      %687 = vmatpush1.bf16.msra.mxu0 %v668
      %688 = vmatprep.subr.bf16.mxu0 0
      %689 = vmatpush1.bf16.msra.mxu0 %v667
      %690 = vmatprep.subr.bf16.mxu0 0
      %691 = vmatpush1.bf16.msra.mxu0 %v666
      %692 = vmatprep.subr.bf16.mxu0 0
      %693 = vmatpush1.bf16.msra.mxu0 %v665
      %694 = vmatprep.subr.bf16.mxu0 0
      %695 = vmatpush1.bf16.msra.mxu0 %v664
      %696 = vmatprep.subr.bf16.mxu0 0
      %697 = vmatpush2.bf16.msra.mxu0 0
      %698 = vmatprep.subr.bf16.mxu0 0
      %699 = vmatpush2.bf16.msra.mxu0 0
      %700 = vmatprep.subr.bf16.mxu0 0
      %701 = vmatpush2.bf16.msra.mxu0 0
      %702 = vmatprep.subr.bf16.mxu0 0
      %703 = vmatpush2.bf16.msra.mxu0 0
      %704 = vmatprep.subr.bf16.mxu0 0
      %705 = vmatpush2.bf16.msra.mxu0 0
      %706 = vmatprep.subr.bf16.mxu0 0
      %707 = vmatpush2.bf16.msra.mxu0 0
      %708 = vmatprep.subr.bf16.mxu0 0
      %709 = vmatpush2.bf16.msra.mxu0 0
      %710 = vmatprep.subr.bf16.mxu0 0
      %711 = vmatpush2.bf16.msra.mxu0 0
      %712 = vmatprep.mubr.bf16.mxu0 0
      %713 = vmatmul.mubr.bf16.gmra.mxu0 %v614
      %v714 = vpop.f32.mrf.mxu0
      %v715 = vadd.f32 0.0, %v714
      %v716 = vpop.f32.mrf.mxu0
      %v717 = vpop.f32.mrf.mxu0
      %v718 = vadd.f32 0.0, %v717
      %v719 = vpop.f32.mrf.mxu0
      %720 = vdwg.mxu0
      %v721 = vadd.f32 %v606, %v715
      %v722 = vadd.f32 %v609, %v718
      %v723 = vld [vmem:[%s4] sm:$0x1]
      %v725 = vlaneseq
      %v726 = vshrl.u32 %v725, 7
      %v727 = vsub.s32 0, %v726
      %v728 = vrot.slane %v723, %v727
      %v730 = vadd.f32 %v721, %v728
      %v731 = vadd.f32 %v722, %v728
      %v732 = vxor.u32 %v730, 2147483648
      %v733 = vxor.u32 %v731, 2147483648
      %v734 = vmul.f32 %v732, 1.442695
      %v735 = vpow.pop %v734
      %v736 = vmul.f32 %v733, 1.442695
      %v737 = vpow.pop %v736
      %v738 = vadd.f32 %v735, 1.0
      %v739 = vadd.f32 %v737, 1.0
      %v740 = vrcp.pop %v738
      %v741 = vmul.f32 1.0, %v740
      %v742 = vrcp.pop %v739
      %v743 = vmul.f32 1.0, %v742
      %v744 = vmul.f32 %v730, %v741
      %v745 = vmul.f32 %v731, %v743
      %s746 = ssub.s32 %s258, 1
      %v747 = vlaneseq
      %v748 = vshrl.u32 %v747, 7
      %v749 = vadd.s32 %v748, 8
      %v750 = vstv %s746
      %v751 = vadd.s32 %v750, %v748
      %v752 = vadd.s32 %v750, %v749
      %vm753 = vcmp.ge.s32.totalorder %v751, 0
      %vm754 = vcmp.ge.s32.totalorder %v752, 0
      %vm755 = vcmp.lt.s32.totalorder %v751, 16
      %vm756 = vcmp.lt.s32.totalorder %v752, 16
      %vm757 = vmand %vm753, %vm755
      %vm758 = vmand %vm754, %vm756
      %v759 = vsel %vm757, 1, 0
      %v760 = vsel %vm758, 1, 0
      %vm761 = vcmp.eq.s32.totalorder %v759, 1
      %vm762 = vcmp.eq.s32.totalorder %v760, 1
      %v763 = vsel %vm761, %v744, 0.0
      %v764 = vsel %vm762, %v745, 0.0
      %v765 = vpack.c.bf16 %v764, %v763
      %v766 = vld [vmem:[%s3] sm:$0xf]
      %v767 = vld [vmem:[%s3 + $0x4] sm:$0xf]
      %v768 = vld [vmem:[%s3 + $0x8] sm:$0xf]
      %v769 = vld [vmem:[%s3 + $0xc] sm:$0xf]
      %v770 = vld [vmem:[%s3 + $0x10] sm:$0xf]
      %v771 = vld [vmem:[%s3 + $0x14] sm:$0xf]
      %v772 = vld [vmem:[%s3 + $0x18] sm:$0xf]
      %v773 = vld [vmem:[%s3 + $0x1c] sm:$0xf]
      %v774 = vld [vmem:[%s3 + $0x20] sm:$0xf]
      %v775 = vld [vmem:[%s3 + $0x24] sm:$0xf]
      %v776 = vld [vmem:[%s3 + $0x28] sm:$0xf]
      %v777 = vld [vmem:[%s3 + $0x2c] sm:$0xf]
      %v778 = vld [vmem:[%s3 + $0x30] sm:$0xf]
      %v779 = vld [vmem:[%s3 + $0x34] sm:$0xf]
      %v780 = vld [vmem:[%s3 + $0x38] sm:$0xf]
      %v781 = vld [vmem:[%s3 + $0x3c] sm:$0xf]
      %s782 = scalar_lea.vmem %s3, 64
      %v783 = vld [vmem:[%s782] sm:$0xf]
      %v784 = vld [vmem:[%s782 + $0x4] sm:$0xf]
      %v785 = vld [vmem:[%s782 + $0x8] sm:$0xf]
      %v786 = vld [vmem:[%s782 + $0xc] sm:$0xf]
      %v787 = vld [vmem:[%s782 + $0x10] sm:$0xf]
      %v788 = vld [vmem:[%s782 + $0x14] sm:$0xf]
      %v789 = vld [vmem:[%s782 + $0x18] sm:$0xf]
      %v790 = vld [vmem:[%s782 + $0x1c] sm:$0xf]
      %v791 = vld [vmem:[%s782 + $0x20] sm:$0xf]
      %v792 = vld [vmem:[%s782 + $0x24] sm:$0xf]
      %v793 = vld [vmem:[%s782 + $0x28] sm:$0xf]
      %v794 = vld [vmem:[%s782 + $0x2c] sm:$0xf]
      %v795 = vld [vmem:[%s782 + $0x30] sm:$0xf]
      %v796 = vld [vmem:[%s782 + $0x34] sm:$0xf]
      %v797 = vld [vmem:[%s782 + $0x38] sm:$0xf]
      %v798 = vld [vmem:[%s782 + $0x3c] sm:$0xf]
      %v800 = vshrl.u32 %v765, 16
      %v802 = vshll.u32 %v765, 16
      %v804 = vrot.slane %v802, 1
      %v805 = vor.u32 %v800, %v804
      %v823 = vunpack.c.l.b16 %v783
      %v824 = vunpack.c.l.b16 %v784
      %v825 = vunpack.c.l.b16 %v785
      %v826 = vunpack.c.l.b16 %v786
      %v827 = vunpack.c.l.b16 %v787
      %v828 = vunpack.c.l.b16 %v788
      %v829 = vunpack.c.l.b16 %v789
      %v830 = vunpack.c.l.b16 %v790
      %v831 = vunpack.c.l.b16 %v791
      %v832 = vunpack.c.l.b16 %v792
      %v833 = vunpack.c.l.b16 %v793
      %v834 = vunpack.c.l.b16 %v794
      %v835 = vunpack.c.l.b16 %v795
      %v836 = vunpack.c.l.b16 %v796
      %v837 = vunpack.c.l.b16 %v797
      %v838 = vunpack.c.l.b16 %v798
      %v839 = vpack.c.b16 %v824, %v823
      %v840 = vpack.c.b16 %v826, %v825
      %v841 = vpack.c.b16 %v828, %v827
      %v842 = vpack.c.b16 %v830, %v829
      %v843 = vpack.c.b16 %v832, %v831
      %v844 = vpack.c.b16 %v834, %v833
      %v845 = vpack.c.b16 %v836, %v835
      %v846 = vpack.c.b16 %v838, %v837
      %855 = vmatprep.subr.bf16.mxu0 0
      %856 = vmatpush1.bf16.msra.mxu0 %v846
      %857 = vmatprep.subr.bf16.mxu0 0
      %858 = vmatpush1.bf16.msra.mxu0 %v845
      %859 = vmatprep.subr.bf16.mxu0 0
      %860 = vmatpush1.bf16.msra.mxu0 %v844
      %861 = vmatprep.subr.bf16.mxu0 0
      %862 = vmatpush1.bf16.msra.mxu0 %v843
      %863 = vmatprep.subr.bf16.mxu0 0
      %864 = vmatpush1.bf16.msra.mxu0 %v842
      %865 = vmatprep.subr.bf16.mxu0 0
      %866 = vmatpush1.bf16.msra.mxu0 %v841
      %867 = vmatprep.subr.bf16.mxu0 0
      %868 = vmatpush1.bf16.msra.mxu0 %v840
      %869 = vmatprep.subr.bf16.mxu0 0
      %870 = vmatpush1.bf16.msra.mxu0 %v839
      %871 = vmatprep.subr.bf16.mxu0 0
      %872 = vmatpush2.bf16.msra.mxu0 0
      %873 = vmatprep.subr.bf16.mxu0 0
      %874 = vmatpush2.bf16.msra.mxu0 0
      %875 = vmatprep.subr.bf16.mxu0 0
      %876 = vmatpush2.bf16.msra.mxu0 0
      %877 = vmatprep.subr.bf16.mxu0 0
      %878 = vmatpush2.bf16.msra.mxu0 0
      %879 = vmatprep.subr.bf16.mxu0 0
      %880 = vmatpush2.bf16.msra.mxu0 0
      %881 = vmatprep.subr.bf16.mxu0 0
      %882 = vmatpush2.bf16.msra.mxu0 0
      %883 = vmatprep.subr.bf16.mxu0 0
      %884 = vmatpush2.bf16.msra.mxu0 0
      %885 = vmatprep.subr.bf16.mxu0 0
      %886 = vmatpush2.bf16.msra.mxu0 0
      %887 = vmatprep.mubr.bf16.mxu0 0
      %888 = vmatmul.mubr.bf16.gmra.mxu0 %v805
      %v889 = vpop.f32.mrf.mxu0
      %v890 = vadd.f32 0.0, %v889
      %v891 = vpop.f32.mrf.mxu0
      %v892 = vpop.f32.mrf.mxu0
      %v893 = vpop.f32.mrf.mxu0
      %894 = vdwg.mxu0
      %v911 = vunpack.c.l.b16 %v766
      %v912 = vunpack.c.l.b16 %v767
      %v913 = vunpack.c.l.b16 %v768
      %v914 = vunpack.c.l.b16 %v769
      %v915 = vunpack.c.l.b16 %v770
      %v916 = vunpack.c.l.b16 %v771
      %v917 = vunpack.c.l.b16 %v772
      %v918 = vunpack.c.l.b16 %v773
      %v919 = vunpack.c.l.b16 %v774
      %v920 = vunpack.c.l.b16 %v775
      %v921 = vunpack.c.l.b16 %v776
      %v922 = vunpack.c.l.b16 %v777
      %v923 = vunpack.c.l.b16 %v778
      %v924 = vunpack.c.l.b16 %v779
      %v925 = vunpack.c.l.b16 %v780
      %v926 = vunpack.c.l.b16 %v781
      %v927 = vpack.c.b16 %v912, %v911
      %v928 = vpack.c.b16 %v914, %v913
      %v929 = vpack.c.b16 %v916, %v915
      %v930 = vpack.c.b16 %v918, %v917
      %v931 = vpack.c.b16 %v920, %v919
      %v932 = vpack.c.b16 %v922, %v921
      %v933 = vpack.c.b16 %v924, %v923
      %v934 = vpack.c.b16 %v926, %v925
      %943 = vmatprep.subr.bf16.mxu0 0
      %944 = vmatpush1.bf16.msra.mxu0 %v934
      %945 = vmatprep.subr.bf16.mxu0 0
      %946 = vmatpush1.bf16.msra.mxu0 %v933
      %947 = vmatprep.subr.bf16.mxu0 0
      %948 = vmatpush1.bf16.msra.mxu0 %v932
      %949 = vmatprep.subr.bf16.mxu0 0
      %950 = vmatpush1.bf16.msra.mxu0 %v931
      %951 = vmatprep.subr.bf16.mxu0 0
      %952 = vmatpush1.bf16.msra.mxu0 %v930
      %953 = vmatprep.subr.bf16.mxu0 0
      %954 = vmatpush1.bf16.msra.mxu0 %v929
      %955 = vmatprep.subr.bf16.mxu0 0
      %956 = vmatpush1.bf16.msra.mxu0 %v928
      %957 = vmatprep.subr.bf16.mxu0 0
      %958 = vmatpush1.bf16.msra.mxu0 %v927
      %959 = vmatprep.subr.bf16.mxu0 0
      %960 = vmatpush2.bf16.msra.mxu0 0
      %961 = vmatprep.subr.bf16.mxu0 0
      %962 = vmatpush2.bf16.msra.mxu0 0
      %963 = vmatprep.subr.bf16.mxu0 0
      %964 = vmatpush2.bf16.msra.mxu0 0
      %965 = vmatprep.subr.bf16.mxu0 0
      %966 = vmatpush2.bf16.msra.mxu0 0
      %967 = vmatprep.subr.bf16.mxu0 0
      %968 = vmatpush2.bf16.msra.mxu0 0
      %969 = vmatprep.subr.bf16.mxu0 0
      %970 = vmatpush2.bf16.msra.mxu0 0
      %971 = vmatprep.subr.bf16.mxu0 0
      %972 = vmatpush2.bf16.msra.mxu0 0
      %973 = vmatprep.subr.bf16.mxu0 0
      %974 = vmatpush2.bf16.msra.mxu0 0
      %975 = vmatprep.mubr.bf16.mxu0 0
      %976 = vmatmul.mubr.bf16.gmra.mxu0 %v765
      %v977 = vpop.f32.mrf.mxu0
      %v978 = vadd.f32 %v890, %v977
      %v979 = vpop.f32.mrf.mxu0
      %v980 = vpop.f32.mrf.mxu0
      %v981 = vpop.f32.mrf.mxu0
      %982 = vdwg.mxu0
      %s983 = scalar_lea.vmem %s3, 128
      %v984 = vld [vmem:[%s983] sm:$0xf]
      %v985 = vld [vmem:[%s983 + $0x4] sm:$0xf]
      %v986 = vld [vmem:[%s983 + $0x8] sm:$0xf]
      %v987 = vld [vmem:[%s983 + $0xc] sm:$0xf]
      %v988 = vld [vmem:[%s983 + $0x10] sm:$0xf]
      %v989 = vld [vmem:[%s983 + $0x14] sm:$0xf]
      %v990 = vld [vmem:[%s983 + $0x18] sm:$0xf]
      %v991 = vld [vmem:[%s983 + $0x1c] sm:$0xf]
      %v992 = vld [vmem:[%s983 + $0x20] sm:$0xf]
      %v993 = vld [vmem:[%s983 + $0x24] sm:$0xf]
      %v994 = vld [vmem:[%s983 + $0x28] sm:$0xf]
      %v995 = vld [vmem:[%s983 + $0x2c] sm:$0xf]
      %v996 = vld [vmem:[%s983 + $0x30] sm:$0xf]
      %v997 = vld [vmem:[%s983 + $0x34] sm:$0xf]
      %v998 = vld [vmem:[%s983 + $0x38] sm:$0xf]
      %v999 = vld [vmem:[%s983 + $0x3c] sm:$0xf]
      %v1001 = vrot.slane %v765, 1
      %v1019 = vunpack.c.l.b16 %v984
      %v1020 = vunpack.c.l.b16 %v985
      %v1021 = vunpack.c.l.b16 %v986
      %v1022 = vunpack.c.l.b16 %v987
      %v1023 = vunpack.c.l.b16 %v988
      %v1024 = vunpack.c.l.b16 %v989
      %v1025 = vunpack.c.l.b16 %v990
      %v1026 = vunpack.c.l.b16 %v991
      %v1027 = vunpack.c.l.b16 %v992
      %v1028 = vunpack.c.l.b16 %v993
      %v1029 = vunpack.c.l.b16 %v994
      %v1030 = vunpack.c.l.b16 %v995
      %v1031 = vunpack.c.l.b16 %v996
      %v1032 = vunpack.c.l.b16 %v997
      %v1033 = vunpack.c.l.b16 %v998
      %v1034 = vunpack.c.l.b16 %v999
      %v1035 = vpack.c.b16 %v1020, %v1019
      %v1036 = vpack.c.b16 %v1022, %v1021
      %v1037 = vpack.c.b16 %v1024, %v1023
      %v1038 = vpack.c.b16 %v1026, %v1025
      %v1039 = vpack.c.b16 %v1028, %v1027
      %v1040 = vpack.c.b16 %v1030, %v1029
      %v1041 = vpack.c.b16 %v1032, %v1031
      %v1042 = vpack.c.b16 %v1034, %v1033
      %1051 = vmatprep.subr.bf16.mxu0 0
      %1052 = vmatpush1.bf16.msra.mxu0 %v1042
      %1053 = vmatprep.subr.bf16.mxu0 0
      %1054 = vmatpush1.bf16.msra.mxu0 %v1041
      %1055 = vmatprep.subr.bf16.mxu0 0
      %1056 = vmatpush1.bf16.msra.mxu0 %v1040
      %1057 = vmatprep.subr.bf16.mxu0 0
      %1058 = vmatpush1.bf16.msra.mxu0 %v1039
      %1059 = vmatprep.subr.bf16.mxu0 0
      %1060 = vmatpush1.bf16.msra.mxu0 %v1038
      %1061 = vmatprep.subr.bf16.mxu0 0
      %1062 = vmatpush1.bf16.msra.mxu0 %v1037
      %1063 = vmatprep.subr.bf16.mxu0 0
      %1064 = vmatpush1.bf16.msra.mxu0 %v1036
      %1065 = vmatprep.subr.bf16.mxu0 0
      %1066 = vmatpush1.bf16.msra.mxu0 %v1035
      %1067 = vmatprep.subr.bf16.mxu0 0
      %1068 = vmatpush2.bf16.msra.mxu0 0
      %1069 = vmatprep.subr.bf16.mxu0 0
      %1070 = vmatpush2.bf16.msra.mxu0 0
      %1071 = vmatprep.subr.bf16.mxu0 0
      %1072 = vmatpush2.bf16.msra.mxu0 0
      %1073 = vmatprep.subr.bf16.mxu0 0
      %1074 = vmatpush2.bf16.msra.mxu0 0
      %1075 = vmatprep.subr.bf16.mxu0 0
      %1076 = vmatpush2.bf16.msra.mxu0 0
      %1077 = vmatprep.subr.bf16.mxu0 0
      %1078 = vmatpush2.bf16.msra.mxu0 0
      %1079 = vmatprep.subr.bf16.mxu0 0
      %1080 = vmatpush2.bf16.msra.mxu0 0
      %1081 = vmatprep.subr.bf16.mxu0 0
      %1082 = vmatpush2.bf16.msra.mxu0 0
      %1083 = vmatprep.mubr.bf16.mxu0 0
      %1084 = vmatmul.mubr.bf16.gmra.mxu0 %v1001
      %v1085 = vpop.f32.mrf.mxu0
      %v1086 = vadd.f32 0.0, %v1085
      %v1087 = vpop.f32.mrf.mxu0
      %v1088 = vpop.f32.mrf.mxu0
      %v1089 = vpop.f32.mrf.mxu0
      %1090 = vdwg.mxu0
      %v1091 = vadd.f32 %v978, %v1086
      %v1092 = vld [vmem:[%s5] sm:$0x1]
      %v1094 = vlaneseq
      %v1095 = vshrl.u32 %v1094, 7
      %v1096 = vsub.s32 0, %v1095
      %v1097 = vrot.slane %v1092, %v1096
      %v1099 = vadd.f32 %v1091, %v1097
      %v1100 = vadd.f32 %v1099, %v370
      %v1101 = vxor.u32 %v1100, 2147483648
      %v1102 = vmul.f32 %v1101, 1.442695
      %v1103 = vpow.pop %v1102
      %v1104 = vadd.f32 %v1103, 1.0
      %v1105 = vrcp.pop %v1104
      %v1106 = vmul.f32 1.0, %v1105
      %v1107 = vmul.f32 %v1100, %v1106
      %1108 = vst [vmem:[%s256] sm:$0xff] %v1107
      %p1109 = scmp.lt.s32.totalorder %s21, 1
      %s1110 = scalar_select %p1109, %s21, 1
      %p1111 = scmp.lt.s32.totalorder %s22, 1
      %s1112 = scalar_select %p1111, %s22, 1
      %s1113 = smul.addr %s1110, 2
      %s1114 = sadd.s32 %s1112, %s1113
      %s1115 = smul.addr %s1114, 8
      %s1116 = scalar_lea.vmem %s6, %s1115
      // Predicated region
      $region125: #{residual_block_forward.1} parent=39 // pred_check
        %p1117 = pneg %p161
      $region126: #{residual_block_forward.1} parent=39 // pred_check_branch
        %1119 = sbr.rel (%p1117) target = $region128
      $region127: #{residual_block_forward.1} parent=39 // pred_region
        _
      $region128: #{residual_block_forward.1} parent=39 // pred_fallthru
        _
    $region40: #{residual_block_forward.1} parent=5 // pred_fallthru
      _
    %p1120 = scmp.le.s32.totalorder 2, %s12
    // Predicated region
    $region129: #{residual_block_forward.1} parent=5 // pred_check
      %p1121 = pneg %p1120
    $region130: #{residual_block_forward.1} parent=5 // pred_check_branch
      %1123 = sbr.rel (%p1121) target = $region132
    $region131: #{residual_block_forward.1} parent=5 // pred_region
      %s1124 = ssub.s32 %s12, 2
      // Predicated region
      $region133: #{residual_block_forward.1} parent=131 // pred_check
        %p1125 = pneg %p167
      $region134: #{residual_block_forward.1} parent=131 // pred_check_branch
        %1127 = sbr.rel (%p1125) target = $region136
      $region135: #{residual_block_forward.1} parent=131 // pred_region
        %p1128 = scmp.lt.s32.totalorder %s23, 1
        %s1129 = scalar_select %p1128, %s23, 1
        %p1130 = scmp.lt.s32.totalorder %s24, 1
        %s1131 = scalar_select %p1130, %s24, 1
        %s1132 = smul.addr %s1129, 2
        %s1133 = sadd.s32 %s1131, %s1132
        %s1134 = smul.addr %s1133, 8
        %s1135 = scalar_lea.vmem %s6, %s1134
      $region136: #{residual_block_forward.1} parent=131 // pred_fallthru
        _
    $region132: #{residual_block_forward.1} parent=5 // pred_fallthru
      _
  $region6: #{residual_block_forward.1} parent=0 // loop_footer
    %s16 = sadd.s32 1, %s12
  $region7: #{residual_block_forward.1} parent=0 // loop_footer_branch
    %11 = sbr.rel target = $region3
  $region8: #{residual_block_forward.1} parent=0 // loop_exit
    _
  %1136 = vsyncmov [#allocation3]
  %s1137 = vpop.sfrf %1136
  %p1138 = scmp.eq.s32.totalorder %s1137, 0
  %p1139 = pneg %p1138
  %1141 = shalt.err (%p1139)
  %s1142 = scalar_lea.sflag [#allocation3], 1
  %1143 = vsyncmov %s1142
  %s1144 = vpop.sfrf %1143
  %p1145 = scmp.eq.s32.totalorder %s1144, 0
  %p1146 = pneg %p1145
  %1148 = shalt.err (%p1146)

</llo_original>
